<compile_context>
chip_gen: v7x
topology: tpu7x:2x2x1
jax: 0.10.0
libtpu: 0.0.40
codegen_flags: <defaults>
</compile_context>

<pallas_src>
import numpy as np
import jax
import jax.numpy as jnp
from jax.experimental import pallas as pl
from jax.experimental.pallas import tpu as pltpu

LANE = 128                    # TPU lane width
MAX_ROWS_PER_TILE = 512       # sublane-rows of 128 pixels per grid step (~1 MiB input block)


# -----------------------------------------------------------------------------
# fix_levels / fix_sizes (plain JAX glue, mirrors the PyTorch reference).
# -----------------------------------------------------------------------------
def fix_levels(matrix, layers, np_rng):
    diff = layers - matrix.shape[1]
    if diff <= 0:
        return matrix
    # TODO(synk): the PyTorch reference uses an unseeded np.random.randint; we
    # use a deterministic host RNG, so duplicated-channel indices are
    # reproducible but not bit-identical to the reference when padding fires.
    idx = np_rng.integers(0, matrix.shape[1], diff)
    return jnp.concatenate([matrix, matrix[:, idx]], axis=1)


def fix_sizes(matrix_in, out_size, np_rng):
    _, n, h, w = matrix_in.shape
    diff_x, diff_y = (out_size[1] - h, out_size[2] - w)
    # Faithful to the reference: nn.ZeroPad2d((l, r, t, b)) pads W with (l, r)
    # and H with (t, b); the reference feeds diff_x into (l, r) and diff_y into
    # (t, b), and we reproduce exactly that.
    pad_w = (diff_x // 2, int(np.ceil(diff_x / 2)))   # last dim (W)
    pad_h = (diff_y // 2, int(np.ceil(diff_y / 2)))   # second-to-last dim (H)
    padded = jnp.pad(matrix_in, ((0, 0), (0, 0), pad_h, pad_w))
    return fix_levels(padded, out_size[0], np_rng)


# -----------------------------------------------------------------------------
# Parameter construction: one packed flat f32 vector + static offset table.
# -----------------------------------------------------------------------------
def _dense_params(key, cin, cout, scale=0.5):
    kw, kb = jax.random.split(key)
    w = jax.random.normal(kw, (cout, cin), jnp.float32) * scale / np.sqrt(cin)
    b = jax.random.normal(kb, (cout,), jnp.float32) * 0.01
    return w, b


def init_params(key, C):
    layers = [
        # cnn_active = CnnInit(C, 1, [C, C, C])
        # TODO(synk): CnnInit definition not provided; modeled as a 1x1-conv
        # stack C -> C -> C -> C -> 1 with ReLU between hidden layers.
        ("a1", C, C, True), ("a2", C, C, True), ("a3", C, C, True), ("a4", C, 1, False),
        # TODO(synk): UNet_active definition not provided; modeled as C -> C 1x1 conv + ReLU.
        ("u1", C, C, True),
        # TODO(synk): CnnShrink definition not provided; modeled as C -> 1 1x1 conv.
        ("s1", C, 1, False),
        # classifier (exact 1x1-conv shapes from the module): 1 -> 4 -> 4 -> 2
        ("c1", 1, 4, True), ("c2", 4, 4, True), ("c3", 4, 2, False),
    ]
    keys = jax.random.split(key, len(layers))
    chunks, offsets, pos = [], {}, 0
    for k, (name, cin, cout, relu) in zip(keys, layers):
        w, b = _dense_params(k, cin, cout)
        offsets[name] = dict(w=pos, b=pos + cin * cout, cin=cin, cout=cout, relu=relu)
        chunks.append(w.reshape(-1))
        chunks.append(b.reshape(-1))
        pos += cin * cout + cout
    packed = jnp.concatenate(chunks)           # tiny (~130 floats) -> SMEM
    return packed, offsets


# -----------------------------------------------------------------------------
# Pallas kernel: the whole per-pixel 1x1-conv chain, unrolled on the VPU.
# -----------------------------------------------------------------------------
def _apply_layer(w_ref, meta, ins):
    """ins: list of (TM, 128) f32 slabs, one per input channel."""
    cin, cout = meta["cin"], meta["cout"]
    w_off, b_off = meta["w"], meta["b"]
    outs = []
    for co in range(cout):
        acc = ins[0] * w_ref[w_off + co * cin]
        for ci in range(1, cin):
            acc = acc + ins[ci] * w_ref[w_off + co * cin + ci]
        acc = acc + w_ref[b_off + co]
        if meta["relu"]:
            acc = jnp.maximum(acc, 0.0)
        outs.append(acc)
    return outs


def _make_kernel(offsets, C):
    def kernel(w_ref, x_ref, active_ref, class_ref, kernel_ref):
        # x_ref: (1, C, TM, 128) -- one pixel tile, all channels, dense vregs.
        xs = [x_ref[0, ci].astype(jnp.float32) for ci in range(C)]

        # cnn_active (CnnInit placeholder): C -> C -> C -> C -> 1
        h = _apply_layer(w_ref, offsets["a1"], xs)
        h = _apply_layer(w_ref, offsets["a2"], h)
        h = _apply_layer(w_ref, offsets["a3"], h)
        active = _apply_layer(w_ref, offsets["a4"], h)          # [ (TM,128) ]
        active_ref[0, 0] = active[0].astype(active_ref.dtype)

        # classifier (exact): 1 -> 4 (ReLU) -> 4 (ReLU) -> 2
        c = _apply_layer(w_ref, offsets["c1"], active)
        c = _apply_layer(w_ref, offsets["c2"], c)
        c = _apply_layer(w_ref, offsets["c3"], c)               # 2 slabs
        class_ref[0, 0] = c[0].astype(class_ref.dtype)
        class_ref[0, 1] = c[1].astype(class_ref.dtype)

        # unet (placeholder) -> cnn_kernel (CnnShrink placeholder)
        u = _apply_layer(w_ref, offsets["u1"], xs)
        k = _apply_layer(w_ref, offsets["s1"], u)
        kernel_ref[0, 0] = k[0].astype(kernel_ref.dtype)

    return kernel


# -----------------------------------------------------------------------------
# Wrapper: no transposes; only free reshapes around the pallas_call.
# -----------------------------------------------------------------------------
def madnet3_forward(x, packed_weights, offsets, input_shape,
                    *, max_rows_per_tile=MAX_ROWS_PER_TILE):
    """x: (B, C_in, H_in, W_in) NCHW, like the PyTorch module."""
    np_rng = np.random.default_rng(0)            # deterministic fix_levels
    x = fix_sizes(x, input_shape, np_rng)        # (B, C, H, W)
    B, C, H, W = x.shape

    hw = H * W
    hw_pad = -(-hw // LANE) * LANE               # round up to lane width
    x_flat = x.reshape(B, C, hw)                 # free reshape (NCHW order kept)
    if hw_pad != hw:
        x_flat = jnp.pad(x_flat, ((0, 0), (0, 0), (0, hw_pad - hw)))
    rows = hw_pad // LANE
    x4 = x_flat.reshape(B, C, rows, LANE)        # free reshape

    # Pixel tile: full extent if small, otherwise a multiple of 8 sublane-rows.
    tm = rows if rows <= max_rows_per_tile else max_rows_per_tile
    grid = (B, pl.cdiv(rows, tm))

    def tile_map(b, t):
        return (b, 0, t, 0)

    kernel = _make_kernel(offsets, C)
    out_shape = (
        jax.ShapeDtypeStruct((B, 1, rows, LANE), jnp.float32),   # active_out
        jax.ShapeDtypeStruct((B, 2, rows, LANE), jnp.float32),   # active_class
        jax.ShapeDtypeStruct((B, 1, rows, LANE), jnp.float32),   # kernel_out
    )
    active4, class4, kern4 = pl.pallas_call(
        kernel,
        out_shape=out_shape,
        grid_spec=pltpu.PrefetchScalarGridSpec(
            num_scalar_prefetch=0,
            grid=grid,
            in_specs=[
                # Packed weights: whole array, resident in SMEM (scalar reads).
                pl.BlockSpec(memory_space=pltpu.MemorySpace.SMEM),
                pl.BlockSpec((1, C, tm, LANE), tile_map),
            ],
            out_specs=[
                pl.BlockSpec((1, 1, tm, LANE), tile_map),
                pl.BlockSpec((1, 2, tm, LANE), tile_map),
                pl.BlockSpec((1, 1, tm, LANE), tile_map),
            ],
        ),
        compiler_params=pltpu.CompilerParams(
            dimension_semantics=("parallel", "parallel")),
    )(packed_weights, x4)

    def unflatten(y4, c_out):
        y = y4.reshape(B, c_out, hw_pad)
        if hw_pad != hw:
            y = y[:, :, :hw]
        return y.reshape(B, c_out, H, W)

    active_out = unflatten(active4, 1)           # (B, 1, H, W)
    active_class = unflatten(class4, 2)          # (B, 2, H, W)
    kernel_out = unflatten(kern4, 1)             # (B, 1, H, W)
    return active_out, active_class, kernel_out


if __name__ == "__main__":
    key = jax.random.PRNGKey(0)
    k_x, k_p = jax.random.split(key)

    B, C, H, W = 2, 4, 16, 16
    input_shape = (C, H, W)                      # MADNet3(input_shape)
    x = jax.random.normal(k_x, (B, C, H, W), jnp.float32)

    packed_weights, offsets = init_params(k_p, C)

    active_out, active_class, kernel_out = madnet3_forward(
        x, packed_weights, offsets, input_shape)
    jax.block_until_ready((active_out, active_class, kernel_out))

    assert active_out.shape == (B, 1, H, W)
    assert active_class.shape == (B, 2, H, W)
    assert kernel_out.shape == (B, 1, H, W)
    assert bool(jnp.all(jnp.isfinite(active_out)))
    assert bool(jnp.all(jnp.isfinite(active_class)))
    assert bool(jnp.all(jnp.isfinite(kernel_out)))
    print("KERNEL_OK")
</pallas_src>

<mosaic_0001>
module attributes {stable_mosaic.version = 11 : i64} {
  func.func @kernel(%arg0: i32, %arg1: i32, %arg2: memref<128xf32, #tpu.memory_space<smem>>, %arg3: memref<1x4x2x128xf32, #tpu.memory_space<vmem>>, %arg4: memref<1x1x2x128xf32, #tpu.memory_space<vmem>>, %arg5: memref<1x2x2x128xf32, #tpu.memory_space<vmem>>, %arg6: memref<1x1x2x128xf32, #tpu.memory_space<vmem>>) attributes {dimension_semantics = [#tpu.dimension_semantics<parallel>, #tpu.dimension_semantics<parallel>], iteration_bounds = array<i64: 2, 1>, scalar_prefetch = 0 : i64, scratch_operands = 0 : i64, tpu.core_type = #tpu.core_type<tc>, window_params = [{transform_indices = @transform_0, window_bounds = array<i64: 128>}, {transform_indices = @transform_1, window_bounds = array<i64: 1, 4, 2, 128>}, {transform_indices = @transform_2, window_bounds = array<i64: 1, 1, 2, 128>}, {transform_indices = @transform_3, window_bounds = array<i64: 1, 2, 2, 128>}, {transform_indices = @transform_4, window_bounds = array<i64: 1, 1, 2, 128>}]} {
    %c0 = arith.constant 0 : index
    %c0_0 = arith.constant 0 : index
    %c0_1 = arith.constant 0 : index
    %c0_2 = arith.constant 0 : index
    %0 = vector.load %arg3[%c0, %c0_0, %c0_1, %c0_2] : memref<1x4x2x128xf32, #tpu.memory_space<vmem>>, vector<1x1x2x128xf32>
    %1 = vector.shape_cast %0 : vector<1x1x2x128xf32> to vector<2x128xf32>
    %c0_3 = arith.constant 0 : index
    %c1 = arith.constant 1 : index
    %c0_4 = arith.constant 0 : index
    %c0_5 = arith.constant 0 : index
    %2 = vector.load %arg3[%c0_3, %c1, %c0_4, %c0_5] : memref<1x4x2x128xf32, #tpu.memory_space<vmem>>, vector<1x1x2x128xf32>
    %3 = vector.shape_cast %2 : vector<1x1x2x128xf32> to vector<2x128xf32>
    %c0_6 = arith.constant 0 : index
    %c2 = arith.constant 2 : index
    %c0_7 = arith.constant 0 : index
    %c0_8 = arith.constant 0 : index
    %4 = vector.load %arg3[%c0_6, %c2, %c0_7, %c0_8] : memref<1x4x2x128xf32, #tpu.memory_space<vmem>>, vector<1x1x2x128xf32>
    %5 = vector.shape_cast %4 : vector<1x1x2x128xf32> to vector<2x128xf32>
    %c0_9 = arith.constant 0 : index
    %c3 = arith.constant 3 : index
    %c0_10 = arith.constant 0 : index
    %c0_11 = arith.constant 0 : index
    %6 = vector.load %arg3[%c0_9, %c3, %c0_10, %c0_11] : memref<1x4x2x128xf32, #tpu.memory_space<vmem>>, vector<1x1x2x128xf32>
    %7 = vector.shape_cast %6 : vector<1x1x2x128xf32> to vector<2x128xf32>
    %c0_12 = arith.constant 0 : index
    %8 = memref.load %arg2[%c0_12] : memref<128xf32, #tpu.memory_space<smem>>
    %9 = vector.broadcast %8 : f32 to vector<2x128xf32>
    %10 = arith.mulf %1, %9 : vector<2x128xf32>
    %c1_13 = arith.constant 1 : index
    %11 = memref.load %arg2[%c1_13] : memref<128xf32, #tpu.memory_space<smem>>
    %12 = vector.broadcast %11 : f32 to vector<2x128xf32>
    %13 = arith.mulf %3, %12 : vector<2x128xf32>
    %14 = arith.addf %10, %13 : vector<2x128xf32>
    %c2_14 = arith.constant 2 : index
    %15 = memref.load %arg2[%c2_14] : memref<128xf32, #tpu.memory_space<smem>>
    %16 = vector.broadcast %15 : f32 to vector<2x128xf32>
    %17 = arith.mulf %5, %16 : vector<2x128xf32>
    %18 = arith.addf %14, %17 : vector<2x128xf32>
    %c3_15 = arith.constant 3 : index
    %19 = memref.load %arg2[%c3_15] : memref<128xf32, #tpu.memory_space<smem>>
    %20 = vector.broadcast %19 : f32 to vector<2x128xf32>
    %21 = arith.mulf %7, %20 : vector<2x128xf32>
    %22 = arith.addf %18, %21 : vector<2x128xf32>
    %c16 = arith.constant 16 : index
    %23 = memref.load %arg2[%c16] : memref<128xf32, #tpu.memory_space<smem>>
    %24 = vector.broadcast %23 : f32 to vector<2x128xf32>
    %25 = arith.addf %22, %24 : vector<2x128xf32>
    %cst = arith.constant 0.000000e+00 : f32
    %26 = vector.broadcast %cst : f32 to vector<2x128xf32>
    %27 = arith.maximumf %25, %26 : vector<2x128xf32>
    %c4 = arith.constant 4 : index
    %28 = memref.load %arg2[%c4] : memref<128xf32, #tpu.memory_space<smem>>
    %29 = vector.broadcast %28 : f32 to vector<2x128xf32>
    %30 = arith.mulf %1, %29 : vector<2x128xf32>
    %c5 = arith.constant 5 : index
    %31 = memref.load %arg2[%c5] : memref<128xf32, #tpu.memory_space<smem>>
    %32 = vector.broadcast %31 : f32 to vector<2x128xf32>
    %33 = arith.mulf %3, %32 : vector<2x128xf32>
    %34 = arith.addf %30, %33 : vector<2x128xf32>
    %c6 = arith.constant 6 : index
    %35 = memref.load %arg2[%c6] : memref<128xf32, #tpu.memory_space<smem>>
    %36 = vector.broadcast %35 : f32 to vector<2x128xf32>
    %37 = arith.mulf %5, %36 : vector<2x128xf32>
    %38 = arith.addf %34, %37 : vector<2x128xf32>
    %c7 = arith.constant 7 : index
    %39 = memref.load %arg2[%c7] : memref<128xf32, #tpu.memory_space<smem>>
    %40 = vector.broadcast %39 : f32 to vector<2x128xf32>
    %41 = arith.mulf %7, %40 : vector<2x128xf32>
    %42 = arith.addf %38, %41 : vector<2x128xf32>
    %c17 = arith.constant 17 : index
    %43 = memref.load %arg2[%c17] : memref<128xf32, #tpu.memory_space<smem>>
    %44 = vector.broadcast %43 : f32 to vector<2x128xf32>
    %45 = arith.addf %42, %44 : vector<2x128xf32>
    %cst_16 = arith.constant 0.000000e+00 : f32
    %46 = vector.broadcast %cst_16 : f32 to vector<2x128xf32>
    %47 = arith.maximumf %45, %46 : vector<2x128xf32>
    %c8 = arith.constant 8 : index
    %48 = memref.load %arg2[%c8] : memref<128xf32, #tpu.memory_space<smem>>
    %49 = vector.broadcast %48 : f32 to vector<2x128xf32>
    %50 = arith.mulf %1, %49 : vector<2x128xf32>
    %c9 = arith.constant 9 : index
    %51 = memref.load %arg2[%c9] : memref<128xf32, #tpu.memory_space<smem>>
    %52 = vector.broadcast %51 : f32 to vector<2x128xf32>
    %53 = arith.mulf %3, %52 : vector<2x128xf32>
    %54 = arith.addf %50, %53 : vector<2x128xf32>
    %c10 = arith.constant 10 : index
    %55 = memref.load %arg2[%c10] : memref<128xf32, #tpu.memory_space<smem>>
    %56 = vector.broadcast %55 : f32 to vector<2x128xf32>
    %57 = arith.mulf %5, %56 : vector<2x128xf32>
    %58 = arith.addf %54, %57 : vector<2x128xf32>
    %c11 = arith.constant 11 : index
    %59 = memref.load %arg2[%c11] : memref<128xf32, #tpu.memory_space<smem>>
    %60 = vector.broadcast %59 : f32 to vector<2x128xf32>
    %61 = arith.mulf %7, %60 : vector<2x128xf32>
    %62 = arith.addf %58, %61 : vector<2x128xf32>
    %c18 = arith.constant 18 : index
    %63 = memref.load %arg2[%c18] : memref<128xf32, #tpu.memory_space<smem>>
    %64 = vector.broadcast %63 : f32 to vector<2x128xf32>
    %65 = arith.addf %62, %64 : vector<2x128xf32>
    %cst_17 = arith.constant 0.000000e+00 : f32
    %66 = vector.broadcast %cst_17 : f32 to vector<2x128xf32>
    %67 = arith.maximumf %65, %66 : vector<2x128xf32>
    %c12 = arith.constant 12 : index
    %68 = memref.load %arg2[%c12] : memref<128xf32, #tpu.memory_space<smem>>
    %69 = vector.broadcast %68 : f32 to vector<2x128xf32>
    %70 = arith.mulf %1, %69 : vector<2x128xf32>
    %c13 = arith.constant 13 : index
    %71 = memref.load %arg2[%c13] : memref<128xf32, #tpu.memory_space<smem>>
    %72 = vector.broadcast %71 : f32 to vector<2x128xf32>
    %73 = arith.mulf %3, %72 : vector<2x128xf32>
    %74 = arith.addf %70, %73 : vector<2x128xf32>
    %c14 = arith.constant 14 : index
    %75 = memref.load %arg2[%c14] : memref<128xf32, #tpu.memory_space<smem>>
    %76 = vector.broadcast %75 : f32 to vector<2x128xf32>
    %77 = arith.mulf %5, %76 : vector<2x128xf32>
    %78 = arith.addf %74, %77 : vector<2x128xf32>
    %c15 = arith.constant 15 : index
    %79 = memref.load %arg2[%c15] : memref<128xf32, #tpu.memory_space<smem>>
    %80 = vector.broadcast %79 : f32 to vector<2x128xf32>
    %81 = arith.mulf %7, %80 : vector<2x128xf32>
    %82 = arith.addf %78, %81 : vector<2x128xf32>
    %c19 = arith.constant 19 : index
    %83 = memref.load %arg2[%c19] : memref<128xf32, #tpu.memory_space<smem>>
    %84 = vector.broadcast %83 : f32 to vector<2x128xf32>
    %85 = arith.addf %82, %84 : vector<2x128xf32>
    %cst_18 = arith.constant 0.000000e+00 : f32
    %86 = vector.broadcast %cst_18 : f32 to vector<2x128xf32>
    %87 = arith.maximumf %85, %86 : vector<2x128xf32>
    %c20 = arith.constant 20 : index
    %88 = memref.load %arg2[%c20] : memref<128xf32, #tpu.memory_space<smem>>
    %89 = vector.broadcast %88 : f32 to vector<2x128xf32>
    %90 = arith.mulf %27, %89 : vector<2x128xf32>
    %c21 = arith.constant 21 : index
    %91 = memref.load %arg2[%c21] : memref<128xf32, #tpu.memory_space<smem>>
    %92 = vector.broadcast %91 : f32 to vector<2x128xf32>
    %93 = arith.mulf %47, %92 : vector<2x128xf32>
    %94 = arith.addf %90, %93 : vector<2x128xf32>
    %c22 = arith.constant 22 : index
    %95 = memref.load %arg2[%c22] : memref<128xf32, #tpu.memory_space<smem>>
    %96 = vector.broadcast %95 : f32 to vector<2x128xf32>
    %97 = arith.mulf %67, %96 : vector<2x128xf32>
    %98 = arith.addf %94, %97 : vector<2x128xf32>
    %c23 = arith.constant 23 : index
    %99 = memref.load %arg2[%c23] : memref<128xf32, #tpu.memory_space<smem>>
    %100 = vector.broadcast %99 : f32 to vector<2x128xf32>
    %101 = arith.mulf %87, %100 : vector<2x128xf32>
    %102 = arith.addf %98, %101 : vector<2x128xf32>
    %c36 = arith.constant 36 : index
    %103 = memref.load %arg2[%c36] : memref<128xf32, #tpu.memory_space<smem>>
    %104 = vector.broadcast %103 : f32 to vector<2x128xf32>
    %105 = arith.addf %102, %104 : vector<2x128xf32>
    %cst_19 = arith.constant 0.000000e+00 : f32
    %106 = vector.broadcast %cst_19 : f32 to vector<2x128xf32>
    %107 = arith.maximumf %105, %106 : vector<2x128xf32>
    %c24 = arith.constant 24 : index
    %108 = memref.load %arg2[%c24] : memref<128xf32, #tpu.memory_space<smem>>
    %109 = vector.broadcast %108 : f32 to vector<2x128xf32>
    %110 = arith.mulf %27, %109 : vector<2x128xf32>
    %c25 = arith.constant 25 : index
    %111 = memref.load %arg2[%c25] : memref<128xf32, #tpu.memory_space<smem>>
    %112 = vector.broadcast %111 : f32 to vector<2x128xf32>
    %113 = arith.mulf %47, %112 : vector<2x128xf32>
    %114 = arith.addf %110, %113 : vector<2x128xf32>
    %c26 = arith.constant 26 : index
    %115 = memref.load %arg2[%c26] : memref<128xf32, #tpu.memory_space<smem>>
    %116 = vector.broadcast %115 : f32 to vector<2x128xf32>
    %117 = arith.mulf %67, %116 : vector<2x128xf32>
    %118 = arith.addf %114, %117 : vector<2x128xf32>
    %c27 = arith.constant 27 : index
    %119 = memref.load %arg2[%c27] : memref<128xf32, #tpu.memory_space<smem>>
    %120 = vector.broadcast %119 : f32 to vector<2x128xf32>
    %121 = arith.mulf %87, %120 : vector<2x128xf32>
    %122 = arith.addf %118, %121 : vector<2x128xf32>
    %c37 = arith.constant 37 : index
    %123 = memref.load %arg2[%c37] : memref<128xf32, #tpu.memory_space<smem>>
    %124 = vector.broadcast %123 : f32 to vector<2x128xf32>
    %125 = arith.addf %122, %124 : vector<2x128xf32>
    %cst_20 = arith.constant 0.000000e+00 : f32
    %126 = vector.broadcast %cst_20 : f32 to vector<2x128xf32>
    %127 = arith.maximumf %125, %126 : vector<2x128xf32>
    %c28 = arith.constant 28 : index
    %128 = memref.load %arg2[%c28] : memref<128xf32, #tpu.memory_space<smem>>
    %129 = vector.broadcast %128 : f32 to vector<2x128xf32>
    %130 = arith.mulf %27, %129 : vector<2x128xf32>
    %c29 = arith.constant 29 : index
    %131 = memref.load %arg2[%c29] : memref<128xf32, #tpu.memory_space<smem>>
    %132 = vector.broadcast %131 : f32 to vector<2x128xf32>
    %133 = arith.mulf %47, %132 : vector<2x128xf32>
    %134 = arith.addf %130, %133 : vector<2x128xf32>
    %c30 = arith.constant 30 : index
    %135 = memref.load %arg2[%c30] : memref<128xf32, #tpu.memory_space<smem>>
    %136 = vector.broadcast %135 : f32 to vector<2x128xf32>
    %137 = arith.mulf %67, %136 : vector<2x128xf32>
    %138 = arith.addf %134, %137 : vector<2x128xf32>
    %c31 = arith.constant 31 : index
    %139 = memref.load %arg2[%c31] : memref<128xf32, #tpu.memory_space<smem>>
    %140 = vector.broadcast %139 : f32 to vector<2x128xf32>
    %141 = arith.mulf %87, %140 : vector<2x128xf32>
    %142 = arith.addf %138, %141 : vector<2x128xf32>
    %c38 = arith.constant 38 : index
    %143 = memref.load %arg2[%c38] : memref<128xf32, #tpu.memory_space<smem>>
    %144 = vector.broadcast %143 : f32 to vector<2x128xf32>
    %145 = arith.addf %142, %144 : vector<2x128xf32>
    %cst_21 = arith.constant 0.000000e+00 : f32
    %146 = vector.broadcast %cst_21 : f32 to vector<2x128xf32>
    %147 = arith.maximumf %145, %146 : vector<2x128xf32>
    %c32 = arith.constant 32 : index
    %148 = memref.load %arg2[%c32] : memref<128xf32, #tpu.memory_space<smem>>
    %149 = vector.broadcast %148 : f32 to vector<2x128xf32>
    %150 = arith.mulf %27, %149 : vector<2x128xf32>
    %c33 = arith.constant 33 : index
    %151 = memref.load %arg2[%c33] : memref<128xf32, #tpu.memory_space<smem>>
    %152 = vector.broadcast %151 : f32 to vector<2x128xf32>
    %153 = arith.mulf %47, %152 : vector<2x128xf32>
    %154 = arith.addf %150, %153 : vector<2x128xf32>
    %c34 = arith.constant 34 : index
    %155 = memref.load %arg2[%c34] : memref<128xf32, #tpu.memory_space<smem>>
    %156 = vector.broadcast %155 : f32 to vector<2x128xf32>
    %157 = arith.mulf %67, %156 : vector<2x128xf32>
    %158 = arith.addf %154, %157 : vector<2x128xf32>
    %c35 = arith.constant 35 : index
    %159 = memref.load %arg2[%c35] : memref<128xf32, #tpu.memory_space<smem>>
    %160 = vector.broadcast %159 : f32 to vector<2x128xf32>
    %161 = arith.mulf %87, %160 : vector<2x128xf32>
    %162 = arith.addf %158, %161 : vector<2x128xf32>
    %c39 = arith.constant 39 : index
    %163 = memref.load %arg2[%c39] : memref<128xf32, #tpu.memory_space<smem>>
    %164 = vector.broadcast %163 : f32 to vector<2x128xf32>
    %165 = arith.addf %162, %164 : vector<2x128xf32>
    %cst_22 = arith.constant 0.000000e+00 : f32
    %166 = vector.broadcast %cst_22 : f32 to vector<2x128xf32>
    %167 = arith.maximumf %165, %166 : vector<2x128xf32>
    %c40 = arith.constant 40 : index
    %168 = memref.load %arg2[%c40] : memref<128xf32, #tpu.memory_space<smem>>
    %169 = vector.broadcast %168 : f32 to vector<2x128xf32>
    %170 = arith.mulf %107, %169 : vector<2x128xf32>
    %c41 = arith.constant 41 : index
    %171 = memref.load %arg2[%c41] : memref<128xf32, #tpu.memory_space<smem>>
    %172 = vector.broadcast %171 : f32 to vector<2x128xf32>
    %173 = arith.mulf %127, %172 : vector<2x128xf32>
    %174 = arith.addf %170, %173 : vector<2x128xf32>
    %c42 = arith.constant 42 : index
    %175 = memref.load %arg2[%c42] : memref<128xf32, #tpu.memory_space<smem>>
    %176 = vector.broadcast %175 : f32 to vector<2x128xf32>
    %177 = arith.mulf %147, %176 : vector<2x128xf32>
    %178 = arith.addf %174, %177 : vector<2x128xf32>
    %c43 = arith.constant 43 : index
    %179 = memref.load %arg2[%c43] : memref<128xf32, #tpu.memory_space<smem>>
    %180 = vector.broadcast %179 : f32 to vector<2x128xf32>
    %181 = arith.mulf %167, %180 : vector<2x128xf32>
    %182 = arith.addf %178, %181 : vector<2x128xf32>
    %c56 = arith.constant 56 : index
    %183 = memref.load %arg2[%c56] : memref<128xf32, #tpu.memory_space<smem>>
    %184 = vector.broadcast %183 : f32 to vector<2x128xf32>
    %185 = arith.addf %182, %184 : vector<2x128xf32>
    %cst_23 = arith.constant 0.000000e+00 : f32
    %186 = vector.broadcast %cst_23 : f32 to vector<2x128xf32>
    %187 = arith.maximumf %185, %186 : vector<2x128xf32>
    %c44 = arith.constant 44 : index
    %188 = memref.load %arg2[%c44] : memref<128xf32, #tpu.memory_space<smem>>
    %189 = vector.broadcast %188 : f32 to vector<2x128xf32>
    %190 = arith.mulf %107, %189 : vector<2x128xf32>
    %c45 = arith.constant 45 : index
    %191 = memref.load %arg2[%c45] : memref<128xf32, #tpu.memory_space<smem>>
    %192 = vector.broadcast %191 : f32 to vector<2x128xf32>
    %193 = arith.mulf %127, %192 : vector<2x128xf32>
    %194 = arith.addf %190, %193 : vector<2x128xf32>
    %c46 = arith.constant 46 : index
    %195 = memref.load %arg2[%c46] : memref<128xf32, #tpu.memory_space<smem>>
    %196 = vector.broadcast %195 : f32 to vector<2x128xf32>
    %197 = arith.mulf %147, %196 : vector<2x128xf32>
    %198 = arith.addf %194, %197 : vector<2x128xf32>
    %c47 = arith.constant 47 : index
    %199 = memref.load %arg2[%c47] : memref<128xf32, #tpu.memory_space<smem>>
    %200 = vector.broadcast %199 : f32 to vector<2x128xf32>
    %201 = arith.mulf %167, %200 : vector<2x128xf32>
    %202 = arith.addf %198, %201 : vector<2x128xf32>
    %c57 = arith.constant 57 : index
    %203 = memref.load %arg2[%c57] : memref<128xf32, #tpu.memory_space<smem>>
    %204 = vector.broadcast %203 : f32 to vector<2x128xf32>
    %205 = arith.addf %202, %204 : vector<2x128xf32>
    %cst_24 = arith.constant 0.000000e+00 : f32
    %206 = vector.broadcast %cst_24 : f32 to vector<2x128xf32>
    %207 = arith.maximumf %205, %206 : vector<2x128xf32>
    %c48 = arith.constant 48 : index
    %208 = memref.load %arg2[%c48] : memref<128xf32, #tpu.memory_space<smem>>
    %209 = vector.broadcast %208 : f32 to vector<2x128xf32>
    %210 = arith.mulf %107, %209 : vector<2x128xf32>
    %c49 = arith.constant 49 : index
    %211 = memref.load %arg2[%c49] : memref<128xf32, #tpu.memory_space<smem>>
    %212 = vector.broadcast %211 : f32 to vector<2x128xf32>
    %213 = arith.mulf %127, %212 : vector<2x128xf32>
    %214 = arith.addf %210, %213 : vector<2x128xf32>
    %c50 = arith.constant 50 : index
    %215 = memref.load %arg2[%c50] : memref<128xf32, #tpu.memory_space<smem>>
    %216 = vector.broadcast %215 : f32 to vector<2x128xf32>
    %217 = arith.mulf %147, %216 : vector<2x128xf32>
    %218 = arith.addf %214, %217 : vector<2x128xf32>
    %c51 = arith.constant 51 : index
    %219 = memref.load %arg2[%c51] : memref<128xf32, #tpu.memory_space<smem>>
    %220 = vector.broadcast %219 : f32 to vector<2x128xf32>
    %221 = arith.mulf %167, %220 : vector<2x128xf32>
    %222 = arith.addf %218, %221 : vector<2x128xf32>
    %c58 = arith.constant 58 : index
    %223 = memref.load %arg2[%c58] : memref<128xf32, #tpu.memory_space<smem>>
    %224 = vector.broadcast %223 : f32 to vector<2x128xf32>
    %225 = arith.addf %222, %224 : vector<2x128xf32>
    %cst_25 = arith.constant 0.000000e+00 : f32
    %226 = vector.broadcast %cst_25 : f32 to vector<2x128xf32>
    %227 = arith.maximumf %225, %226 : vector<2x128xf32>
    %c52 = arith.constant 52 : index
    %228 = memref.load %arg2[%c52] : memref<128xf32, #tpu.memory_space<smem>>
    %229 = vector.broadcast %228 : f32 to vector<2x128xf32>
    %230 = arith.mulf %107, %229 : vector<2x128xf32>
    %c53 = arith.constant 53 : index
    %231 = memref.load %arg2[%c53] : memref<128xf32, #tpu.memory_space<smem>>
    %232 = vector.broadcast %231 : f32 to vector<2x128xf32>
    %233 = arith.mulf %127, %232 : vector<2x128xf32>
    %234 = arith.addf %230, %233 : vector<2x128xf32>
    %c54 = arith.constant 54 : index
    %235 = memref.load %arg2[%c54] : memref<128xf32, #tpu.memory_space<smem>>
    %236 = vector.broadcast %235 : f32 to vector<2x128xf32>
    %237 = arith.mulf %147, %236 : vector<2x128xf32>
    %238 = arith.addf %234, %237 : vector<2x128xf32>
    %c55 = arith.constant 55 : index
    %239 = memref.load %arg2[%c55] : memref<128xf32, #tpu.memory_space<smem>>
    %240 = vector.broadcast %239 : f32 to vector<2x128xf32>
    %241 = arith.mulf %167, %240 : vector<2x128xf32>
    %242 = arith.addf %238, %241 : vector<2x128xf32>
    %c59 = arith.constant 59 : index
    %243 = memref.load %arg2[%c59] : memref<128xf32, #tpu.memory_space<smem>>
    %244 = vector.broadcast %243 : f32 to vector<2x128xf32>
    %245 = arith.addf %242, %244 : vector<2x128xf32>
    %cst_26 = arith.constant 0.000000e+00 : f32
    %246 = vector.broadcast %cst_26 : f32 to vector<2x128xf32>
    %247 = arith.maximumf %245, %246 : vector<2x128xf32>
    %c60 = arith.constant 60 : index
    %248 = memref.load %arg2[%c60] : memref<128xf32, #tpu.memory_space<smem>>
    %249 = vector.broadcast %248 : f32 to vector<2x128xf32>
    %250 = arith.mulf %187, %249 : vector<2x128xf32>
    %c61 = arith.constant 61 : index
    %251 = memref.load %arg2[%c61] : memref<128xf32, #tpu.memory_space<smem>>
    %252 = vector.broadcast %251 : f32 to vector<2x128xf32>
    %253 = arith.mulf %207, %252 : vector<2x128xf32>
    %254 = arith.addf %250, %253 : vector<2x128xf32>
    %c62 = arith.constant 62 : index
    %255 = memref.load %arg2[%c62] : memref<128xf32, #tpu.memory_space<smem>>
    %256 = vector.broadcast %255 : f32 to vector<2x128xf32>
    %257 = arith.mulf %227, %256 : vector<2x128xf32>
    %258 = arith.addf %254, %257 : vector<2x128xf32>
    %c63 = arith.constant 63 : index
    %259 = memref.load %arg2[%c63] : memref<128xf32, #tpu.memory_space<smem>>
    %260 = vector.broadcast %259 : f32 to vector<2x128xf32>
    %261 = arith.mulf %247, %260 : vector<2x128xf32>
    %262 = arith.addf %258, %261 : vector<2x128xf32>
    %c64 = arith.constant 64 : index
    %263 = memref.load %arg2[%c64] : memref<128xf32, #tpu.memory_space<smem>>
    %264 = vector.broadcast %263 : f32 to vector<2x128xf32>
    %265 = arith.addf %262, %264 : vector<2x128xf32>
    %c0_27 = arith.constant 0 : index
    %c0_28 = arith.constant 0 : index
    %c0_29 = arith.constant 0 : index
    %c0_30 = arith.constant 0 : index
    %266 = vector.load %arg4[%c0_27, %c0_28, %c0_29, %c0_30] : memref<1x1x2x128xf32, #tpu.memory_space<vmem>>, vector<1x1x2x128xf32>
    %267 = vector.shape_cast %266 : vector<1x1x2x128xf32> to vector<2x128xf32>
    %268 = vector.shape_cast %265 : vector<2x128xf32> to vector<1x1x2x128xf32>
    tpu.vector_store %arg4[%c0_27, %c0_28, %c0_29, %c0_30], %268 {strides = array<i32>} : memref<1x1x2x128xf32, #tpu.memory_space<vmem>>, vector<1x1x2x128xf32>,
    %c90 = arith.constant 90 : index
    %269 = memref.load %arg2[%c90] : memref<128xf32, #tpu.memory_space<smem>>
    %270 = vector.broadcast %269 : f32 to vector<2x128xf32>
    %271 = arith.mulf %265, %270 : vector<2x128xf32>
    %c94 = arith.constant 94 : index
    %272 = memref.load %arg2[%c94] : memref<128xf32, #tpu.memory_space<smem>>
    %273 = vector.broadcast %272 : f32 to vector<2x128xf32>
    %274 = arith.addf %271, %273 : vector<2x128xf32>
    %cst_31 = arith.constant 0.000000e+00 : f32
    %275 = vector.broadcast %cst_31 : f32 to vector<2x128xf32>
    %276 = arith.maximumf %274, %275 : vector<2x128xf32>
    %c91 = arith.constant 91 : index
    %277 = memref.load %arg2[%c91] : memref<128xf32, #tpu.memory_space<smem>>
    %278 = vector.broadcast %277 : f32 to vector<2x128xf32>
    %279 = arith.mulf %265, %278 : vector<2x128xf32>
    %c95 = arith.constant 95 : index
    %280 = memref.load %arg2[%c95] : memref<128xf32, #tpu.memory_space<smem>>
    %281 = vector.broadcast %280 : f32 to vector<2x128xf32>
    %282 = arith.addf %279, %281 : vector<2x128xf32>
    %cst_32 = arith.constant 0.000000e+00 : f32
    %283 = vector.broadcast %cst_32 : f32 to vector<2x128xf32>
    %284 = arith.maximumf %282, %283 : vector<2x128xf32>
    %c92 = arith.constant 92 : index
    %285 = memref.load %arg2[%c92] : memref<128xf32, #tpu.memory_space<smem>>
    %286 = vector.broadcast %285 : f32 to vector<2x128xf32>
    %287 = arith.mulf %265, %286 : vector<2x128xf32>
    %c96 = arith.constant 96 : index
    %288 = memref.load %arg2[%c96] : memref<128xf32, #tpu.memory_space<smem>>
    %289 = vector.broadcast %288 : f32 to vector<2x128xf32>
    %290 = arith.addf %287, %289 : vector<2x128xf32>
    %cst_33 = arith.constant 0.000000e+00 : f32
    %291 = vector.broadcast %cst_33 : f32 to vector<2x128xf32>
    %292 = arith.maximumf %290, %291 : vector<2x128xf32>
    %c93 = arith.constant 93 : index
    %293 = memref.load %arg2[%c93] : memref<128xf32, #tpu.memory_space<smem>>
    %294 = vector.broadcast %293 : f32 to vector<2x128xf32>
    %295 = arith.mulf %265, %294 : vector<2x128xf32>
    %c97 = arith.constant 97 : index
    %296 = memref.load %arg2[%c97] : memref<128xf32, #tpu.memory_space<smem>>
    %297 = vector.broadcast %296 : f32 to vector<2x128xf32>
    %298 = arith.addf %295, %297 : vector<2x128xf32>
    %cst_34 = arith.constant 0.000000e+00 : f32
    %299 = vector.broadcast %cst_34 : f32 to vector<2x128xf32>
    %300 = arith.maximumf %298, %299 : vector<2x128xf32>
    %c98 = arith.constant 98 : index
    %301 = memref.load %arg2[%c98] : memref<128xf32, #tpu.memory_space<smem>>
    %302 = vector.broadcast %301 : f32 to vector<2x128xf32>
    %303 = arith.mulf %276, %302 : vector<2x128xf32>
    %c99 = arith.constant 99 : index
    %304 = memref.load %arg2[%c99] : memref<128xf32, #tpu.memory_space<smem>>
    %305 = vector.broadcast %304 : f32 to vector<2x128xf32>
    %306 = arith.mulf %284, %305 : vector<2x128xf32>
    %307 = arith.addf %303, %306 : vector<2x128xf32>
    %c100 = arith.constant 100 : index
    %308 = memref.load %arg2[%c100] : memref<128xf32, #tpu.memory_space<smem>>
    %309 = vector.broadcast %308 : f32 to vector<2x128xf32>
    %310 = arith.mulf %292, %309 : vector<2x128xf32>
    %311 = arith.addf %307, %310 : vector<2x128xf32>
    %c101 = arith.constant 101 : index
    %312 = memref.load %arg2[%c101] : memref<128xf32, #tpu.memory_space<smem>>
    %313 = vector.broadcast %312 : f32 to vector<2x128xf32>
    %314 = arith.mulf %300, %313 : vector<2x128xf32>
    %315 = arith.addf %311, %314 : vector<2x128xf32>
    %c114 = arith.constant 114 : index
    %316 = memref.load %arg2[%c114] : memref<128xf32, #tpu.memory_space<smem>>
    %317 = vector.broadcast %316 : f32 to vector<2x128xf32>
    %318 = arith.addf %315, %317 : vector<2x128xf32>
    %cst_35 = arith.constant 0.000000e+00 : f32
    %319 = vector.broadcast %cst_35 : f32 to vector<2x128xf32>
    %320 = arith.maximumf %318, %319 : vector<2x128xf32>
    %c102 = arith.constant 102 : index
    %321 = memref.load %arg2[%c102] : memref<128xf32, #tpu.memory_space<smem>>
    %322 = vector.broadcast %321 : f32 to vector<2x128xf32>
    %323 = arith.mulf %276, %322 : vector<2x128xf32>
    %c103 = arith.constant 103 : index
    %324 = memref.load %arg2[%c103] : memref<128xf32, #tpu.memory_space<smem>>
    %325 = vector.broadcast %324 : f32 to vector<2x128xf32>
    %326 = arith.mulf %284, %325 : vector<2x128xf32>
    %327 = arith.addf %323, %326 : vector<2x128xf32>
    %c104 = arith.constant 104 : index
    %328 = memref.load %arg2[%c104] : memref<128xf32, #tpu.memory_space<smem>>
    %329 = vector.broadcast %328 : f32 to vector<2x128xf32>
    %330 = arith.mulf %292, %329 : vector<2x128xf32>
    %331 = arith.addf %327, %330 : vector<2x128xf32>
    %c105 = arith.constant 105 : index
    %332 = memref.load %arg2[%c105] : memref<128xf32, #tpu.memory_space<smem>>
    %333 = vector.broadcast %332 : f32 to vector<2x128xf32>
    %334 = arith.mulf %300, %333 : vector<2x128xf32>
    %335 = arith.addf %331, %334 : vector<2x128xf32>
    %c115 = arith.constant 115 : index
    %336 = memref.load %arg2[%c115] : memref<128xf32, #tpu.memory_space<smem>>
    %337 = vector.broadcast %336 : f32 to vector<2x128xf32>
    %338 = arith.addf %335, %337 : vector<2x128xf32>
    %cst_36 = arith.constant 0.000000e+00 : f32
    %339 = vector.broadcast %cst_36 : f32 to vector<2x128xf32>
    %340 = arith.maximumf %338, %339 : vector<2x128xf32>
    %c106 = arith.constant 106 : index
    %341 = memref.load %arg2[%c106] : memref<128xf32, #tpu.memory_space<smem>>
    %342 = vector.broadcast %341 : f32 to vector<2x128xf32>
    %343 = arith.mulf %276, %342 : vector<2x128xf32>
    %c107 = arith.constant 107 : index
    %344 = memref.load %arg2[%c107] : memref<128xf32, #tpu.memory_space<smem>>
    %345 = vector.broadcast %344 : f32 to vector<2x128xf32>
    %346 = arith.mulf %284, %345 : vector<2x128xf32>
    %347 = arith.addf %343, %346 : vector<2x128xf32>
    %c108 = arith.constant 108 : index
    %348 = memref.load %arg2[%c108] : memref<128xf32, #tpu.memory_space<smem>>
    %349 = vector.broadcast %348 : f32 to vector<2x128xf32>
    %350 = arith.mulf %292, %349 : vector<2x128xf32>
    %351 = arith.addf %347, %350 : vector<2x128xf32>
    %c109 = arith.constant 109 : index
    %352 = memref.load %arg2[%c109] : memref<128xf32, #tpu.memory_space<smem>>
    %353 = vector.broadcast %352 : f32 to vector<2x128xf32>
    %354 = arith.mulf %300, %353 : vector<2x128xf32>
    %355 = arith.addf %351, %354 : vector<2x128xf32>
    %c116 = arith.constant 116 : index
    %356 = memref.load %arg2[%c116] : memref<128xf32, #tpu.memory_space<smem>>
    %357 = vector.broadcast %356 : f32 to vector<2x128xf32>
    %358 = arith.addf %355, %357 : vector<2x128xf32>
    %cst_37 = arith.constant 0.000000e+00 : f32
    %359 = vector.broadcast %cst_37 : f32 to vector<2x128xf32>
    %360 = arith.maximumf %358, %359 : vector<2x128xf32>
    %c110 = arith.constant 110 : index
    %361 = memref.load %arg2[%c110] : memref<128xf32, #tpu.memory_space<smem>>
    %362 = vector.broadcast %361 : f32 to vector<2x128xf32>
    %363 = arith.mulf %276, %362 : vector<2x128xf32>
    %c111 = arith.constant 111 : index
    %364 = memref.load %arg2[%c111] : memref<128xf32, #tpu.memory_space<smem>>
    %365 = vector.broadcast %364 : f32 to vector<2x128xf32>
    %366 = arith.mulf %284, %365 : vector<2x128xf32>
    %367 = arith.addf %363, %366 : vector<2x128xf32>
    %c112 = arith.constant 112 : index
    %368 = memref.load %arg2[%c112] : memref<128xf32, #tpu.memory_space<smem>>
    %369 = vector.broadcast %368 : f32 to vector<2x128xf32>
    %370 = arith.mulf %292, %369 : vector<2x128xf32>
    %371 = arith.addf %367, %370 : vector<2x128xf32>
    %c113 = arith.constant 113 : index
    %372 = memref.load %arg2[%c113] : memref<128xf32, #tpu.memory_space<smem>>
    %373 = vector.broadcast %372 : f32 to vector<2x128xf32>
    %374 = arith.mulf %300, %373 : vector<2x128xf32>
    %375 = arith.addf %371, %374 : vector<2x128xf32>
    %c117 = arith.constant 117 : index
    %376 = memref.load %arg2[%c117] : memref<128xf32, #tpu.memory_space<smem>>
    %377 = vector.broadcast %376 : f32 to vector<2x128xf32>
    %378 = arith.addf %375, %377 : vector<2x128xf32>
    %cst_38 = arith.constant 0.000000e+00 : f32
    %379 = vector.broadcast %cst_38 : f32 to vector<2x128xf32>
    %380 = arith.maximumf %378, %379 : vector<2x128xf32>
    %c118 = arith.constant 118 : index
    %381 = memref.load %arg2[%c118] : memref<128xf32, #tpu.memory_space<smem>>
    %382 = vector.broadcast %381 : f32 to vector<2x128xf32>
    %383 = arith.mulf %320, %382 : vector<2x128xf32>
    %c119 = arith.constant 119 : index
    %384 = memref.load %arg2[%c119] : memref<128xf32, #tpu.memory_space<smem>>
    %385 = vector.broadcast %384 : f32 to vector<2x128xf32>
    %386 = arith.mulf %340, %385 : vector<2x128xf32>
    %387 = arith.addf %383, %386 : vector<2x128xf32>
    %c120 = arith.constant 120 : index
    %388 = memref.load %arg2[%c120] : memref<128xf32, #tpu.memory_space<smem>>
    %389 = vector.broadcast %388 : f32 to vector<2x128xf32>
    %390 = arith.mulf %360, %389 : vector<2x128xf32>
    %391 = arith.addf %387, %390 : vector<2x128xf32>
    %c121 = arith.constant 121 : index
    %392 = memref.load %arg2[%c121] : memref<128xf32, #tpu.memory_space<smem>>
    %393 = vector.broadcast %392 : f32 to vector<2x128xf32>
    %394 = arith.mulf %380, %393 : vector<2x128xf32>
    %395 = arith.addf %391, %394 : vector<2x128xf32>
    %c126 = arith.constant 126 : index
    %396 = memref.load %arg2[%c126] : memref<128xf32, #tpu.memory_space<smem>>
    %397 = vector.broadcast %396 : f32 to vector<2x128xf32>
    %398 = arith.addf %395, %397 : vector<2x128xf32>
    %c122 = arith.constant 122 : index
    %399 = memref.load %arg2[%c122] : memref<128xf32, #tpu.memory_space<smem>>
    %400 = vector.broadcast %399 : f32 to vector<2x128xf32>
    %401 = arith.mulf %320, %400 : vector<2x128xf32>
    %c123 = arith.constant 123 : index
    %402 = memref.load %arg2[%c123] : memref<128xf32, #tpu.memory_space<smem>>
    %403 = vector.broadcast %402 : f32 to vector<2x128xf32>
    %404 = arith.mulf %340, %403 : vector<2x128xf32>
    %405 = arith.addf %401, %404 : vector<2x128xf32>
    %c124 = arith.constant 124 : index
    %406 = memref.load %arg2[%c124] : memref<128xf32, #tpu.memory_space<smem>>
    %407 = vector.broadcast %406 : f32 to vector<2x128xf32>
    %408 = arith.mulf %360, %407 : vector<2x128xf32>
    %409 = arith.addf %405, %408 : vector<2x128xf32>
    %c125 = arith.constant 125 : index
    %410 = memref.load %arg2[%c125] : memref<128xf32, #tpu.memory_space<smem>>
    %411 = vector.broadcast %410 : f32 to vector<2x128xf32>
    %412 = arith.mulf %380, %411 : vector<2x128xf32>
    %413 = arith.addf %409, %412 : vector<2x128xf32>
    %c127 = arith.constant 127 : index
    %414 = memref.load %arg2[%c127] : memref<128xf32, #tpu.memory_space<smem>>
    %415 = vector.broadcast %414 : f32 to vector<2x128xf32>
    %416 = arith.addf %413, %415 : vector<2x128xf32>
    %c0_39 = arith.constant 0 : index
    %c0_40 = arith.constant 0 : index
    %c0_41 = arith.constant 0 : index
    %c0_42 = arith.constant 0 : index
    %417 = vector.load %arg5[%c0_39, %c0_40, %c0_41, %c0_42] : memref<1x2x2x128xf32, #tpu.memory_space<vmem>>, vector<1x1x2x128xf32>
    %418 = vector.shape_cast %417 : vector<1x1x2x128xf32> to vector<2x128xf32>
    %419 = vector.shape_cast %398 : vector<2x128xf32> to vector<1x1x2x128xf32>
    tpu.vector_store %arg5[%c0_39, %c0_40, %c0_41, %c0_42], %419 {strides = array<i32>} : memref<1x2x2x128xf32, #tpu.memory_space<vmem>>, vector<1x1x2x128xf32>,
    %c0_43 = arith.constant 0 : index
    %c1_44 = arith.constant 1 : index
    %c0_45 = arith.constant 0 : index
    %c0_46 = arith.constant 0 : index
    %420 = vector.load %arg5[%c0_43, %c1_44, %c0_45, %c0_46] : memref<1x2x2x128xf32, #tpu.memory_space<vmem>>, vector<1x1x2x128xf32>
    %421 = vector.shape_cast %420 : vector<1x1x2x128xf32> to vector<2x128xf32>
    %422 = vector.shape_cast %416 : vector<2x128xf32> to vector<1x1x2x128xf32>
    tpu.vector_store %arg5[%c0_43, %c1_44, %c0_45, %c0_46], %422 {strides = array<i32>} : memref<1x2x2x128xf32, #tpu.memory_space<vmem>>, vector<1x1x2x128xf32>,
    %c65 = arith.constant 65 : index
    %423 = memref.load %arg2[%c65] : memref<128xf32, #tpu.memory_space<smem>>
    %424 = vector.broadcast %423 : f32 to vector<2x128xf32>
    %425 = arith.mulf %1, %424 : vector<2x128xf32>
    %c66 = arith.constant 66 : index
    %426 = memref.load %arg2[%c66] : memref<128xf32, #tpu.memory_space<smem>>
    %427 = vector.broadcast %426 : f32 to vector<2x128xf32>
    %428 = arith.mulf %3, %427 : vector<2x128xf32>
    %429 = arith.addf %425, %428 : vector<2x128xf32>
    %c67 = arith.constant 67 : index
    %430 = memref.load %arg2[%c67] : memref<128xf32, #tpu.memory_space<smem>>
    %431 = vector.broadcast %430 : f32 to vector<2x128xf32>
    %432 = arith.mulf %5, %431 : vector<2x128xf32>
    %433 = arith.addf %429, %432 : vector<2x128xf32>
    %c68 = arith.constant 68 : index
    %434 = memref.load %arg2[%c68] : memref<128xf32, #tpu.memory_space<smem>>
    %435 = vector.broadcast %434 : f32 to vector<2x128xf32>
    %436 = arith.mulf %7, %435 : vector<2x128xf32>
    %437 = arith.addf %433, %436 : vector<2x128xf32>
    %c81 = arith.constant 81 : index
    %438 = memref.load %arg2[%c81] : memref<128xf32, #tpu.memory_space<smem>>
    %439 = vector.broadcast %438 : f32 to vector<2x128xf32>
    %440 = arith.addf %437, %439 : vector<2x128xf32>
    %cst_47 = arith.constant 0.000000e+00 : f32
    %441 = vector.broadcast %cst_47 : f32 to vector<2x128xf32>
    %442 = arith.maximumf %440, %441 : vector<2x128xf32>
    %c69 = arith.constant 69 : index
    %443 = memref.load %arg2[%c69] : memref<128xf32, #tpu.memory_space<smem>>
    %444 = vector.broadcast %443 : f32 to vector<2x128xf32>
    %445 = arith.mulf %1, %444 : vector<2x128xf32>
    %c70 = arith.constant 70 : index
    %446 = memref.load %arg2[%c70] : memref<128xf32, #tpu.memory_space<smem>>
    %447 = vector.broadcast %446 : f32 to vector<2x128xf32>
    %448 = arith.mulf %3, %447 : vector<2x128xf32>
    %449 = arith.addf %445, %448 : vector<2x128xf32>
    %c71 = arith.constant 71 : index
    %450 = memref.load %arg2[%c71] : memref<128xf32, #tpu.memory_space<smem>>
    %451 = vector.broadcast %450 : f32 to vector<2x128xf32>
    %452 = arith.mulf %5, %451 : vector<2x128xf32>
    %453 = arith.addf %449, %452 : vector<2x128xf32>
    %c72 = arith.constant 72 : index
    %454 = memref.load %arg2[%c72] : memref<128xf32, #tpu.memory_space<smem>>
    %455 = vector.broadcast %454 : f32 to vector<2x128xf32>
    %456 = arith.mulf %7, %455 : vector<2x128xf32>
    %457 = arith.addf %453, %456 : vector<2x128xf32>
    %c82 = arith.constant 82 : index
    %458 = memref.load %arg2[%c82] : memref<128xf32, #tpu.memory_space<smem>>
    %459 = vector.broadcast %458 : f32 to vector<2x128xf32>
    %460 = arith.addf %457, %459 : vector<2x128xf32>
    %cst_48 = arith.constant 0.000000e+00 : f32
    %461 = vector.broadcast %cst_48 : f32 to vector<2x128xf32>
    %462 = arith.maximumf %460, %461 : vector<2x128xf32>
    %c73 = arith.constant 73 : index
    %463 = memref.load %arg2[%c73] : memref<128xf32, #tpu.memory_space<smem>>
    %464 = vector.broadcast %463 : f32 to vector<2x128xf32>
    %465 = arith.mulf %1, %464 : vector<2x128xf32>
    %c74 = arith.constant 74 : index
    %466 = memref.load %arg2[%c74] : memref<128xf32, #tpu.memory_space<smem>>
    %467 = vector.broadcast %466 : f32 to vector<2x128xf32>
    %468 = arith.mulf %3, %467 : vector<2x128xf32>
    %469 = arith.addf %465, %468 : vector<2x128xf32>
    %c75 = arith.constant 75 : index
    %470 = memref.load %arg2[%c75] : memref<128xf32, #tpu.memory_space<smem>>
    %471 = vector.broadcast %470 : f32 to vector<2x128xf32>
    %472 = arith.mulf %5, %471 : vector<2x128xf32>
    %473 = arith.addf %469, %472 : vector<2x128xf32>
    %c76 = arith.constant 76 : index
    %474 = memref.load %arg2[%c76] : memref<128xf32, #tpu.memory_space<smem>>
    %475 = vector.broadcast %474 : f32 to vector<2x128xf32>
    %476 = arith.mulf %7, %475 : vector<2x128xf32>
    %477 = arith.addf %473, %476 : vector<2x128xf32>
    %c83 = arith.constant 83 : index
    %478 = memref.load %arg2[%c83] : memref<128xf32, #tpu.memory_space<smem>>
    %479 = vector.broadcast %478 : f32 to vector<2x128xf32>
    %480 = arith.addf %477, %479 : vector<2x128xf32>
    %cst_49 = arith.constant 0.000000e+00 : f32
    %481 = vector.broadcast %cst_49 : f32 to vector<2x128xf32>
    %482 = arith.maximumf %480, %481 : vector<2x128xf32>
    %c77 = arith.constant 77 : index
    %483 = memref.load %arg2[%c77] : memref<128xf32, #tpu.memory_space<smem>>
    %484 = vector.broadcast %483 : f32 to vector<2x128xf32>
    %485 = arith.mulf %1, %484 : vector<2x128xf32>
    %c78 = arith.constant 78 : index
    %486 = memref.load %arg2[%c78] : memref<128xf32, #tpu.memory_space<smem>>
    %487 = vector.broadcast %486 : f32 to vector<2x128xf32>
    %488 = arith.mulf %3, %487 : vector<2x128xf32>
    %489 = arith.addf %485, %488 : vector<2x128xf32>
    %c79 = arith.constant 79 : index
    %490 = memref.load %arg2[%c79] : memref<128xf32, #tpu.memory_space<smem>>
    %491 = vector.broadcast %490 : f32 to vector<2x128xf32>
    %492 = arith.mulf %5, %491 : vector<2x128xf32>
    %493 = arith.addf %489, %492 : vector<2x128xf32>
    %c80 = arith.constant 80 : index
    %494 = memref.load %arg2[%c80] : memref<128xf32, #tpu.memory_space<smem>>
    %495 = vector.broadcast %494 : f32 to vector<2x128xf32>
    %496 = arith.mulf %7, %495 : vector<2x128xf32>
    %497 = arith.addf %493, %496 : vector<2x128xf32>
    %c84 = arith.constant 84 : index
    %498 = memref.load %arg2[%c84] : memref<128xf32, #tpu.memory_space<smem>>
    %499 = vector.broadcast %498 : f32 to vector<2x128xf32>
    %500 = arith.addf %497, %499 : vector<2x128xf32>
    %cst_50 = arith.constant 0.000000e+00 : f32
    %501 = vector.broadcast %cst_50 : f32 to vector<2x128xf32>
    %502 = arith.maximumf %500, %501 : vector<2x128xf32>
    %c85 = arith.constant 85 : index
    %503 = memref.load %arg2[%c85] : memref<128xf32, #tpu.memory_space<smem>>
    %504 = vector.broadcast %503 : f32 to vector<2x128xf32>
    %505 = arith.mulf %442, %504 : vector<2x128xf32>
    %c86 = arith.constant 86 : index
    %506 = memref.load %arg2[%c86] : memref<128xf32, #tpu.memory_space<smem>>
    %507 = vector.broadcast %506 : f32 to vector<2x128xf32>
    %508 = arith.mulf %462, %507 : vector<2x128xf32>
    %509 = arith.addf %505, %508 : vector<2x128xf32>
    %c87 = arith.constant 87 : index
    %510 = memref.load %arg2[%c87] : memref<128xf32, #tpu.memory_space<smem>>
    %511 = vector.broadcast %510 : f32 to vector<2x128xf32>
    %512 = arith.mulf %482, %511 : vector<2x128xf32>
    %513 = arith.addf %509, %512 : vector<2x128xf32>
    %c88 = arith.constant 88 : index
    %514 = memref.load %arg2[%c88] : memref<128xf32, #tpu.memory_space<smem>>
    %515 = vector.broadcast %514 : f32 to vector<2x128xf32>
    %516 = arith.mulf %502, %515 : vector<2x128xf32>
    %517 = arith.addf %513, %516 : vector<2x128xf32>
    %c89 = arith.constant 89 : index
    %518 = memref.load %arg2[%c89] : memref<128xf32, #tpu.memory_space<smem>>
    %519 = vector.broadcast %518 : f32 to vector<2x128xf32>
    %520 = arith.addf %517, %519 : vector<2x128xf32>
    %c0_51 = arith.constant 0 : index
    %c0_52 = arith.constant 0 : index
    %c0_53 = arith.constant 0 : index
    %c0_54 = arith.constant 0 : index
    %521 = vector.load %arg6[%c0_51, %c0_52, %c0_53, %c0_54] : memref<1x1x2x128xf32, #tpu.memory_space<vmem>>, vector<1x1x2x128xf32>
    %522 = vector.shape_cast %521 : vector<1x1x2x128xf32> to vector<2x128xf32>
    %523 = vector.shape_cast %520 : vector<2x128xf32> to vector<1x1x2x128xf32>
    tpu.vector_store %arg6[%c0_51, %c0_52, %c0_53, %c0_54], %523 {strides = array<i32>} : memref<1x1x2x128xf32, #tpu.memory_space<vmem>>, vector<1x1x2x128xf32>,
    return
  }
  func.func @transform_0(%arg0: i32, %arg1: i32) -> i32 {
    %c0_i32 = arith.constant 0 : i32
    %c0_i32_0 = arith.constant 0 : i32
    return %c0_i32 : i32
  }
  func.func @transform_1(%arg0: i32, %arg1: i32) -> (i32, i32, i32, i32) {
    %c0_i32 = arith.constant 0 : i32
    %c0_i32_0 = arith.constant 0 : i32
    %c0_i32_1 = arith.constant 0 : i32
    return %arg0, %c0_i32, %arg1, %c0_i32_0 : i32, i32, i32, i32
  }
  func.func @transform_2(%arg0: i32, %arg1: i32) -> (i32, i32, i32, i32) {
    %c0_i32 = arith.constant 0 : i32
    %c0_i32_0 = arith.constant 0 : i32
    %c0_i32_1 = arith.constant 0 : i32
    return %arg0, %c0_i32, %arg1, %c0_i32_0 : i32, i32, i32, i32
  }
  func.func @transform_3(%arg0: i32, %arg1: i32) -> (i32, i32, i32, i32) {
    %c0_i32 = arith.constant 0 : i32
    %c0_i32_0 = arith.constant 0 : i32
    %c0_i32_1 = arith.constant 0 : i32
    return %arg0, %c0_i32, %arg1, %c0_i32_0 : i32, i32, i32, i32
  }
  func.func @transform_4(%arg0: i32, %arg1: i32) -> (i32, i32, i32, i32) {
    %c0_i32 = arith.constant 0 : i32
    %c0_i32_0 = arith.constant 0 : i32
    %c0_i32_1 = arith.constant 0 : i32
    return %arg0, %c0_i32, %arg1, %c0_i32_0 : i32, i32, i32, i32
  }
}

</mosaic_0001>

<llo_original>
// kernel: tpu_custom_call.1
$region0: #{tpu_custom_call.1}
  #allocation0 [shape = 'u32[]', space=smem, size = 0x4, offset = 0x4, fixed_abs, tag = 'smem constant byte address 0x4 - core index']
  #allocation1 [shape = 'u32[144,128]{1,0:T(1,128)}', space=vmem, size = 0x12000, scoped, tag = 'internal scratch']
  %s0 = inlined_call_operand.hbm [shape: f32[128], index: 0, kind: input, shape index: {}]
  %s1 = inlined_call_operand.hbm [shape: f32[2,4,2,128], index: 1, kind: input, shape index: {}]
  %s2 = inlined_call_operand.hbm [shape: f32[2,1,2,128], index: 2, kind: output, shape index: {0}]
  %s3 = inlined_call_operand.hbm [shape: f32[2,2,2,128], index: 3, kind: output, shape index: {1}]
  %s4 = inlined_call_operand.hbm [shape: f32[2,1,2,128], index: 4, kind: output, shape index: {2}]
  %5 = xla_tuple %s2, %s3, %s4
  %s6 = sld [smem:[#allocation0]]
  $region65: #{tpu_custom_call.1} parent=0
    _
  %s8 = ssub.s32 1, %s6
  %s9 = scalar_select 0, %s8, %s6
  $region1: #{tpu_custom_call.1} parent=0
    #allocation2 [shape = 'u8[512]{0}', space=smem, size = 0x200, scoped, tag = 'input window, operand 0, single buffered']
    #allocation3 [shape = 's32[2]{0}', space=sflag, size = 0x8, scoped, tag = 'scoped memory for tpu_custom_call.1']
    #allocation4 [shape = 's32[2]{0}', space=sflag, size = 0x8, scoped, tag = 'scoped memory for tpu_custom_call.1']
    #allocation5 [shape = 's32[2]{0}', space=sflag, size = 0x8, scoped, tag = 'scoped memory for tpu_custom_call.1']
    #allocation6 [shape = 'u8[8192]{0}', space=vmem, size = 0x2000, scoped, tag = 'input window, operand 1']
    #allocation7 [shape = 'u8[2048]{0}', space=vmem, size = 0x800, scoped, tag = 'output window, operand 0']
    #allocation8 [shape = 'u8[4096]{0}', space=vmem, size = 0x1000, scoped, tag = 'output window, operand 1']
    #allocation9 [shape = 's32[2]{0}', space=sflag, size = 0x8, scoped, tag = 'scoped memory for tpu_custom_call.1']
    #allocation10 [shape = 'u8[2048]{0}', space=vmem, size = 0x800, scoped, tag = 'output window, operand 2']
    %10 = vsyncpa [#allocation5], 0
    %11 = vsyncpa [#allocation3], 0
    %s12 = scalar_lea.sflag [#allocation3], 1
    %13 = vsyncpa %s12, 0
    %14 = vsyncpa [#allocation4], 0
    %s15 = scalar_lea.sflag [#allocation4], 1
    %16 = vsyncpa %s15, 0
    %17 = vsyncpa [#allocation9], 0
    %s18 = scalar_lea.sflag [#allocation9], 1
    %19 = vsyncpa %s18, 0
    loop: start=0, step=1, limit=4
    $region2: #{tpu_custom_call.1} parent=1 // loop_pre_header
      _
    $region3: #{tpu_custom_call.1} parent=1 // loop_header
      %s21 = sphi 0, %s25
      %p22 = scmp.ge.s32.totalorder %s21, 4
      %s28 = sphi 0, %s40
      %s29 = sphi 0, %s36
      %s30 = sphi 0, %s28
      %s31 = sphi 0, %s29
      %s32 = sphi 0, %s30
      %s33 = sphi 0, %s31
      %s41 = sphi 0, %s41
      %s43 = sphi 0, %s41
      %s44 = sphi 0, %s43
      %s58 = sphi 0, %s44
      %s66 = sphi 0, %s68
      %s69 = sphi 0, %s66
      %s70 = sphi 0, %s69
      %s86 = sphi 0, %s70
      %s94 = sphi 0, %s96
      %s97 = sphi 0, %s94
      %s98 = sphi 0, %s97
      %s114 = sphi 0, %s98
      %s122 = sphi 0, %s124
      %s125 = sphi 0, %s122
      %s126 = sphi 0, %s125
      %s142 = sphi 0, %s126
      %s150 = sphi 0, %s152
      %s153 = sphi 0, %s150
      %s154 = sphi 0, %s153
      %s170 = sphi 0, %s154
    $region4: #{tpu_custom_call.1} parent=1 // loop_header_branch
      %24 = sbr.rel (%p22) target = $region8
    $region5: #{tpu_custom_call.1} parent=1 // loop_body
      %s26 = ssub.s32 %s21, 1
      %s27 = ssub.s32 %s21, 2
      %s34 = sadd.s32 1, %s29
      %p35 = scmp.ge.s32.totalorder %s34, 1
      %s36 = scalar_select %p35, 0, %s34
      %s37 = sadd.s32 1, %s28
      %s38 = scalar_select %p35, %s37, %s28
      %p39 = scmp.ge.s32.totalorder %s38, 2
      %s40 = scalar_select %p39, 0, %s38
      %s42 = sadd.s32 %s41, 1
      %p45 = scmp.eq.s32.totalorder %s21, 1
      %p46 = scmp.ne.s32.totalorder %s41, %s43
      %p47 = scmp.eq.s32.totalorder %s21, 0
      %p48 = por %p46, %p47
      %p49 = scmp.ne.s32.totalorder %s41, %s43
      %p50 = scmp.eq.s32.totalorder %s26, 1
      %p51 = por %p49, %p50
      %p52 = scmp.ne.s32.totalorder %s43, %s44
      %p53 = scmp.eq.s32.totalorder %s26, 0
      %p54 = por %p52, %p53
      %p55 = scmp.ne.s32.totalorder %s43, %s44
      %p56 = scmp.eq.s32.totalorder %s27, 1
      %p57 = por %p55, %p56
      %p59 = scmp.ne.s32.totalorder %s44, %s58
      %p60 = scmp.eq.s32.totalorder %s27, 0
      %p61 = por %p59, %p60
      %s62 = ssub.s32 %s28, %s40
      %s63 = ssub.s32 %s29, %s36
      %s64 = sor.u32 %s62, %s63
      %p65 = scmp.eq.s32.totalorder %s64, 0
      %s67 = sadd.s32 %s66, 1
      %s68 = scalar_select %p65, %s66, %s67
      %p71 = pneg %p65
      %p72 = scmp.eq.s32.totalorder %s21, 1
      %p73 = por %p71, %p72
      %p74 = scmp.ne.s32.totalorder %s66, %s69
      %p75 = scmp.eq.s32.totalorder %s21, 0
      %p76 = por %p74, %p75
      %p77 = scmp.ne.s32.totalorder %s66, %s69
      %p78 = scmp.eq.s32.totalorder %s26, 1
      %p79 = por %p77, %p78
      %p80 = scmp.ne.s32.totalorder %s69, %s70
      %p81 = scmp.eq.s32.totalorder %s26, 0
      %p82 = por %p80, %p81
      %p83 = scmp.ne.s32.totalorder %s69, %s70
      %p84 = scmp.eq.s32.totalorder %s27, 1
      %p85 = por %p83, %p84
      %p87 = scmp.ne.s32.totalorder %s70, %s86
      %p88 = scmp.eq.s32.totalorder %s27, 0
      %p89 = por %p87, %p88
      %s90 = ssub.s32 %s28, %s40
      %s91 = ssub.s32 %s29, %s36
      %s92 = sor.u32 %s90, %s91
      %p93 = scmp.eq.s32.totalorder %s92, 0
      %s95 = sadd.s32 %s94, 1
      %s96 = scalar_select %p93, %s94, %s95
      %p99 = pneg %p93
      %p100 = scmp.eq.s32.totalorder %s21, 1
      %p101 = por %p99, %p100
      %p102 = scmp.ne.s32.totalorder %s94, %s97
      %p103 = scmp.eq.s32.totalorder %s21, 0
      %p104 = por %p102, %p103
      %p105 = scmp.ne.s32.totalorder %s94, %s97
      %p106 = scmp.eq.s32.totalorder %s26, 1
      %p107 = por %p105, %p106
      %p108 = scmp.ne.s32.totalorder %s97, %s98
      %p109 = scmp.eq.s32.totalorder %s26, 0
      %p110 = por %p108, %p109
      %p111 = scmp.ne.s32.totalorder %s97, %s98
      %p112 = scmp.eq.s32.totalorder %s27, 1
      %p113 = por %p111, %p112
      %p115 = scmp.ne.s32.totalorder %s98, %s114
      %p116 = scmp.eq.s32.totalorder %s27, 0
      %p117 = por %p115, %p116
      %s118 = ssub.s32 %s28, %s40
      %s119 = ssub.s32 %s29, %s36
      %s120 = sor.u32 %s118, %s119
      %p121 = scmp.eq.s32.totalorder %s120, 0
      %s123 = sadd.s32 %s122, 1
      %s124 = scalar_select %p121, %s122, %s123
      %p127 = pneg %p121
      %p128 = scmp.eq.s32.totalorder %s21, 1
      %p129 = por %p127, %p128
      %p130 = scmp.ne.s32.totalorder %s122, %s125
      %p131 = scmp.eq.s32.totalorder %s21, 0
      %p132 = por %p130, %p131
      %p133 = scmp.ne.s32.totalorder %s122, %s125
      %p134 = scmp.eq.s32.totalorder %s26, 1
      %p135 = por %p133, %p134
      %p136 = scmp.ne.s32.totalorder %s125, %s126
      %p137 = scmp.eq.s32.totalorder %s26, 0
      %p138 = por %p136, %p137
      %p139 = scmp.ne.s32.totalorder %s125, %s126
      %p140 = scmp.eq.s32.totalorder %s27, 1
      %p141 = por %p139, %p140
      %p143 = scmp.ne.s32.totalorder %s126, %s142
      %p144 = scmp.eq.s32.totalorder %s27, 0
      %p145 = por %p143, %p144
      %s146 = ssub.s32 %s28, %s40
      %s147 = ssub.s32 %s29, %s36
      %s148 = sor.u32 %s146, %s147
      %p149 = scmp.eq.s32.totalorder %s148, 0
      %s151 = sadd.s32 %s150, 1
      %s152 = scalar_select %p149, %s150, %s151
      %p155 = pneg %p149
      %p156 = scmp.eq.s32.totalorder %s21, 1
      %p157 = por %p155, %p156
      %p158 = scmp.ne.s32.totalorder %s150, %s153
      %p159 = scmp.eq.s32.totalorder %s21, 0
      %p160 = por %p158, %p159
      %p161 = scmp.ne.s32.totalorder %s150, %s153
      %p162 = scmp.eq.s32.totalorder %s26, 1
      %p163 = por %p161, %p162
      %p164 = scmp.ne.s32.totalorder %s153, %s154
      %p165 = scmp.eq.s32.totalorder %s26, 0
      %p166 = por %p164, %p165
      %p167 = scmp.ne.s32.totalorder %s153, %s154
      %p168 = scmp.eq.s32.totalorder %s27, 1
      %p169 = por %p167, %p168
      %p171 = scmp.ne.s32.totalorder %s154, %s170
      %p172 = scmp.eq.s32.totalorder %s27, 0
      %p173 = por %p171, %p172
      %p174 = scmp.le.s32.totalorder 1, %s21
      %p175 = scmp.lt.s32.totalorder %s21, 3
      %p176 = pnand %p174, %p175
      %p177 = pneg %p176
      // Predicated region
      $region9: #{tpu_custom_call.1} parent=5 // pred_check
        _
      $region10: #{tpu_custom_call.1} parent=5 // pred_check_branch
        %179 = sbr.rel (%p176) target = $region12
      $region11: #{tpu_custom_call.1} parent=5 // pred_region
        %s180 = ssub.s32 %s21, 1
        // Predicated region
        $region13: #{tpu_custom_call.1} parent=11 // pred_check
          %p181 = pneg %p54
        $region14: #{tpu_custom_call.1} parent=11 // pred_check_branch
          %183 = sbr.rel (%p181) target = $region16
        $region15: #{tpu_custom_call.1} parent=11 // pred_region
          %s185 = ssub.s32 16, 16
          %186 = vsyncadd [#allocation5], %s185
          %189 = dma.hbm_to_smem %s0, 16, [#allocation2], [#allocation5]
        $region16: #{tpu_custom_call.1} parent=11 // pred_fallthru
          _
      $region12: #{tpu_custom_call.1} parent=5 // pred_fallthru
        _
      %p190 = scmp.lt.s32.totalorder %s21, 2
      // Predicated region
      $region17: #{tpu_custom_call.1} parent=5 // pred_check
        %p191 = pneg %p190
      $region18: #{tpu_custom_call.1} parent=5 // pred_check_branch
        %193 = sbr.rel (%p191) target = $region20
      $region19: #{tpu_custom_call.1} parent=5 // pred_region
        // Predicated region
        $region21: #{tpu_custom_call.1} parent=19 // pred_check
          %p194 = pneg %p76
        $region22: #{tpu_custom_call.1} parent=19 // pred_check_branch
          %196 = sbr.rel (%p194) target = $region24
        $region23: #{tpu_custom_call.1} parent=19 // pred_region
          %s197 = sand.u32 %s66, 1
          %s198 = scalar_lea.sflag [#allocation3], %s197
          %s199 = sand.u32 %s66, 1
          %s200 = smul.addr %s199, 8
          %s201 = scalar_lea.vmem [#allocation6], %s200
          %s203 = ssub.s32 128, 128
          %204 = vsyncadd %s198, %s203
          %s205 = smul.addr %s28, 4
          %s206 = sadd.s32 %s29, %s205
          %s207 = smul.addr %s206, 32
          %s208 = scalar_lea.hbm %s1, %s207
          %s209 = sshll.u32 %s201, 4
          %s210 = int_to_ptr.vmem [resolvable:$true] %s209
          %215 = dma.hbm_to_vmem [thread:$0]  %s208, 128, %s210, %s198, 32, 32, 2
        $region24: #{tpu_custom_call.1} parent=19 // pred_fallthru
          _
      $region20: #{tpu_custom_call.1} parent=5 // pred_fallthru
        _
      %p216 = scmp.le.s32.totalorder 1, %s21
      %p217 = scmp.lt.s32.totalorder %s21, 3
      %p218 = pnand %p216, %p217
      %p219 = pneg %p218
      // Predicated region
      $region25: #{tpu_custom_call.1} parent=5 // pred_check
        _
      $region26: #{tpu_custom_call.1} parent=5 // pred_check_branch
        %221 = sbr.rel (%p218) target = $region28
      $region27: #{tpu_custom_call.1} parent=5 // pred_region
        %s222 = ssub.s32 %s21, 1
        // Predicated region
        $region29: #{tpu_custom_call.1} parent=27 // pred_check
          %p223 = pneg %p54
        $region30: #{tpu_custom_call.1} parent=27 // pred_check_branch
          %225 = sbr.rel (%p223) target = $region32
        $region31: #{tpu_custom_call.1} parent=27 // pred_region
          %226 = dma.done [#allocation5], 16
        $region32: #{tpu_custom_call.1} parent=27 // pred_fallthru
          _
        %s227 = sand.u32 %s69, 1
        %s228 = scalar_lea.sflag [#allocation3], %s227
        %s229 = sand.u32 %s69, 1
        %s230 = smul.addr %s229, 8
        %s231 = scalar_lea.vmem [#allocation6], %s230
        // Predicated region
        $region33: #{tpu_custom_call.1} parent=27 // pred_check
          %p232 = pneg %p82
        $region34: #{tpu_custom_call.1} parent=27 // pred_check_branch
          %234 = sbr.rel (%p232) target = $region36
        $region35: #{tpu_custom_call.1} parent=27 // pred_region
          %235 = dma.done %s228, 128
        $region36: #{tpu_custom_call.1} parent=27 // pred_fallthru
          _
        %236 = sfence
        %p237 = pneg %p54
        %p238 = pneg %p51
        %s239 = sand.u32 %s69, 1
        %s240 = scalar_lea.sflag [#allocation3], %s239
        %s241 = sand.u32 %s69, 1
        %s242 = smul.addr %s241, 8
        %s243 = scalar_lea.vmem [#allocation6], %s242
        %p244 = pneg %p82
        %p245 = pneg %p79
        %p246 = pneg %p110
        %p247 = pneg %p107
        %s248 = sand.u32 %s97, 1
        %s249 = scalar_lea.sflag [#allocation4], %s248
        %s250 = sand.u32 %s97, 1
        %s251 = smul.addr %s250, 2
        %s252 = scalar_lea.vmem [#allocation7], %s251
        %p253 = pneg %p138
        %p254 = pneg %p135
        %s255 = sand.u32 %s26, 1
        %s256 = scalar_lea.sflag [#allocation9], %s255
        %s257 = sand.u32 %s125, 1
        %s258 = smul.addr %s257, 4
        %s259 = scalar_lea.vmem [#allocation8], %s258
        %p260 = pneg %p166
        %p261 = pneg %p163
        %s262 = sand.u32 %s26, 1
        %s263 = scalar_lea.sflag [#allocation9], %s262
        %s264 = sand.u32 %s153, 1
        %s265 = smul.addr %s264, 2
        %s266 = scalar_lea.vmem [#allocation10], %s265
        %v267 = vld [vmem:[%s231] sm:$0x3]
        %s268 = scalar_lea.vmem %s231, 2 [#allocation6]
        %v269 = vld [vmem:[%s268] sm:$0x3]
        %s270 = scalar_lea.vmem %s231, 4 [#allocation6]
        %v271 = vld [vmem:[%s270] sm:$0x3]
        %s272 = scalar_lea.vmem %s231, 6 [#allocation6]
        %v273 = vld [vmem:[%s272] sm:$0x3]
        %s274 = sld [smem:[#allocation2]]
        %v275 = vstv %s274
        %v276 = vmul.f32 %v267, %v275
        %s277 = sld [smem:[#allocation2 + $0x1]]
        %v278 = vstv %s277
        %v279 = vmul.f32 %v269, %v278
        %v280 = vadd.f32 %v276, %v279
        %s281 = sld [smem:[#allocation2 + $0x2]]
        %v282 = vstv %s281
        %v283 = vmul.f32 %v271, %v282
        %v284 = vadd.f32 %v280, %v283
        %s285 = sld [smem:[#allocation2 + $0x3]]
        %v286 = vstv %s285
        %v287 = vmul.f32 %v273, %v286
        %v288 = vadd.f32 %v284, %v287
        %s289 = sld [smem:[#allocation2 + $0x10]]
        %v290 = vstv %s289
        %v291 = vadd.f32 %v288, %v290
        %v292 = vmax.f32 %v291, 0.0
        %s293 = sld [smem:[#allocation2 + $0x4]]
        %v294 = vstv %s293
        %v295 = vmul.f32 %v267, %v294
        %s296 = sld [smem:[#allocation2 + $0x5]]
        %v297 = vstv %s296
        %v298 = vmul.f32 %v269, %v297
        %v299 = vadd.f32 %v295, %v298
        %s300 = sld [smem:[#allocation2 + $0x6]]
        %v301 = vstv %s300
        %v302 = vmul.f32 %v271, %v301
        %v303 = vadd.f32 %v299, %v302
        %s304 = sld [smem:[#allocation2 + $0x7]]
        %v305 = vstv %s304
        %v306 = vmul.f32 %v273, %v305
        %v307 = vadd.f32 %v303, %v306
        %s308 = sld [smem:[#allocation2 + $0x11]]
        %v309 = vstv %s308
        %v310 = vadd.f32 %v307, %v309
        %v311 = vmax.f32 %v310, 0.0
        %s312 = sld [smem:[#allocation2 + $0x8]]
        %v313 = vstv %s312
        %v314 = vmul.f32 %v267, %v313
        %s315 = sld [smem:[#allocation2 + $0x9]]
        %v316 = vstv %s315
        %v317 = vmul.f32 %v269, %v316
        %v318 = vadd.f32 %v314, %v317
        %s319 = sld [smem:[#allocation2 + $0xa]]
        %v320 = vstv %s319
        %v321 = vmul.f32 %v271, %v320
        %v322 = vadd.f32 %v318, %v321
        %s323 = sld [smem:[#allocation2 + $0xb]]
        %v324 = vstv %s323
        %v325 = vmul.f32 %v273, %v324
        %v326 = vadd.f32 %v322, %v325
        %s327 = sld [smem:[#allocation2 + $0x12]]
        %v328 = vstv %s327
        %v329 = vadd.f32 %v326, %v328
        %v330 = vmax.f32 %v329, 0.0
        %s331 = sld [smem:[#allocation2 + $0xc]]
        %v332 = vstv %s331
        %v333 = vmul.f32 %v267, %v332
        %s334 = sld [smem:[#allocation2 + $0xd]]
        %v335 = vstv %s334
        %v336 = vmul.f32 %v269, %v335
        %v337 = vadd.f32 %v333, %v336
        %s338 = sld [smem:[#allocation2 + $0xe]]
        %v339 = vstv %s338
        %v340 = vmul.f32 %v271, %v339
        %v341 = vadd.f32 %v337, %v340
        %s342 = sld [smem:[#allocation2 + $0xf]]
        %v343 = vstv %s342
        %v344 = vmul.f32 %v273, %v343
        %v345 = vadd.f32 %v341, %v344
        %s346 = sld [smem:[#allocation2 + $0x13]]
        %v347 = vstv %s346
        %v348 = vadd.f32 %v345, %v347
        %v349 = vmax.f32 %v348, 0.0
        %s350 = sld [smem:[#allocation2 + $0x14]]
        %v351 = vstv %s350
        %v352 = vmul.f32 %v292, %v351
        %s353 = sld [smem:[#allocation2 + $0x15]]
        %v354 = vstv %s353
        %v355 = vmul.f32 %v311, %v354
        %v356 = vadd.f32 %v352, %v355
        %s357 = sld [smem:[#allocation2 + $0x16]]
        %v358 = vstv %s357
        %v359 = vmul.f32 %v330, %v358
        %v360 = vadd.f32 %v356, %v359
        %s361 = sld [smem:[#allocation2 + $0x17]]
        %v362 = vstv %s361
        %v363 = vmul.f32 %v349, %v362
        %v364 = vadd.f32 %v360, %v363
        %s365 = sld [smem:[#allocation2 + $0x24]]
        %v366 = vstv %s365
        %v367 = vadd.f32 %v364, %v366
        %v368 = vmax.f32 %v367, 0.0
        %s369 = sld [smem:[#allocation2 + $0x18]]
        %v370 = vstv %s369
        %v371 = vmul.f32 %v292, %v370
        %s372 = sld [smem:[#allocation2 + $0x19]]
        %v373 = vstv %s372
        %v374 = vmul.f32 %v311, %v373
        %v375 = vadd.f32 %v371, %v374
        %s376 = sld [smem:[#allocation2 + $0x1a]]
        %v377 = vstv %s376
        %v378 = vmul.f32 %v330, %v377
        %v379 = vadd.f32 %v375, %v378
        %s380 = sld [smem:[#allocation2 + $0x1b]]
        %v381 = vstv %s380
        %v382 = vmul.f32 %v349, %v381
        %v383 = vadd.f32 %v379, %v382
        %s384 = sld [smem:[#allocation2 + $0x25]]
        %v385 = vstv %s384
        %v386 = vadd.f32 %v383, %v385
        %v387 = vmax.f32 %v386, 0.0
        %s388 = sld [smem:[#allocation2 + $0x1c]]
        %v389 = vstv %s388
        %v390 = vmul.f32 %v292, %v389
        %s391 = sld [smem:[#allocation2 + $0x1d]]
        %v392 = vstv %s391
        %v393 = vmul.f32 %v311, %v392
        %v394 = vadd.f32 %v390, %v393
        %s395 = sld [smem:[#allocation2 + $0x1e]]
        %v396 = vstv %s395
        %v397 = vmul.f32 %v330, %v396
        %v398 = vadd.f32 %v394, %v397
        %s399 = sld [smem:[#allocation2 + $0x1f]]
        %v400 = vstv %s399
        %v401 = vmul.f32 %v349, %v400
        %v402 = vadd.f32 %v398, %v401
        %s403 = sld [smem:[#allocation2 + $0x26]]
        %v404 = vstv %s403
        %v405 = vadd.f32 %v402, %v404
        %v406 = vmax.f32 %v405, 0.0
        %s407 = sld [smem:[#allocation2 + $0x20]]
        %v408 = vstv %s407
        %v409 = vmul.f32 %v292, %v408
        %s410 = sld [smem:[#allocation2 + $0x21]]
        %v411 = vstv %s410
        %v412 = vmul.f32 %v311, %v411
        %v413 = vadd.f32 %v409, %v412
        %s414 = sld [smem:[#allocation2 + $0x22]]
        %v415 = vstv %s414
        %v416 = vmul.f32 %v330, %v415
        %v417 = vadd.f32 %v413, %v416
        %s418 = sld [smem:[#allocation2 + $0x23]]
        %v419 = vstv %s418
        %v420 = vmul.f32 %v349, %v419
        %v421 = vadd.f32 %v417, %v420
        %s422 = sld [smem:[#allocation2 + $0x27]]
        %v423 = vstv %s422
        %v424 = vadd.f32 %v421, %v423
        %v425 = vmax.f32 %v424, 0.0
        %s426 = sld [smem:[#allocation2 + $0x28]]
        %v427 = vstv %s426
        %v428 = vmul.f32 %v368, %v427
        %s429 = sld [smem:[#allocation2 + $0x29]]
        %v430 = vstv %s429
        %v431 = vmul.f32 %v387, %v430
        %v432 = vadd.f32 %v428, %v431
        %s433 = sld [smem:[#allocation2 + $0x2a]]
        %v434 = vstv %s433
        %v435 = vmul.f32 %v406, %v434
        %v436 = vadd.f32 %v432, %v435
        %s437 = sld [smem:[#allocation2 + $0x2b]]
        %v438 = vstv %s437
        %v439 = vmul.f32 %v425, %v438
        %v440 = vadd.f32 %v436, %v439
        %s441 = sld [smem:[#allocation2 + $0x38]]
        %v442 = vstv %s441
        %v443 = vadd.f32 %v440, %v442
        %v444 = vmax.f32 %v443, 0.0
        %s445 = sld [smem:[#allocation2 + $0x2c]]
        %v446 = vstv %s445
        %v447 = vmul.f32 %v368, %v446
        %s448 = sld [smem:[#allocation2 + $0x2d]]
        %v449 = vstv %s448
        %v450 = vmul.f32 %v387, %v449
        %v451 = vadd.f32 %v447, %v450
        %s452 = sld [smem:[#allocation2 + $0x2e]]
        %v453 = vstv %s452
        %v454 = vmul.f32 %v406, %v453
        %v455 = vadd.f32 %v451, %v454
        %s456 = sld [smem:[#allocation2 + $0x2f]]
        %v457 = vstv %s456
        %v458 = vmul.f32 %v425, %v457
        %v459 = vadd.f32 %v455, %v458
        %s460 = sld [smem:[#allocation2 + $0x39]]
        %v461 = vstv %s460
        %v462 = vadd.f32 %v459, %v461
        %v463 = vmax.f32 %v462, 0.0
        %s464 = sld [smem:[#allocation2 + $0x30]]
        %v465 = vstv %s464
        %v466 = vmul.f32 %v368, %v465
        %s467 = sld [smem:[#allocation2 + $0x31]]
        %v468 = vstv %s467
        %v469 = vmul.f32 %v387, %v468
        %v470 = vadd.f32 %v466, %v469
        %s471 = sld [smem:[#allocation2 + $0x32]]
        %v472 = vstv %s471
        %v473 = vmul.f32 %v406, %v472
        %v474 = vadd.f32 %v470, %v473
        %s475 = sld [smem:[#allocation2 + $0x33]]
        %v476 = vstv %s475
        %v477 = vmul.f32 %v425, %v476
        %v478 = vadd.f32 %v474, %v477
        %s479 = sld [smem:[#allocation2 + $0x3a]]
        %v480 = vstv %s479
        %v481 = vadd.f32 %v478, %v480
        %v482 = vmax.f32 %v481, 0.0
        %s483 = sld [smem:[#allocation2 + $0x34]]
        %v484 = vstv %s483
        %v485 = vmul.f32 %v368, %v484
        %s486 = sld [smem:[#allocation2 + $0x35]]
        %v487 = vstv %s486
        %v488 = vmul.f32 %v387, %v487
        %v489 = vadd.f32 %v485, %v488
        %s490 = sld [smem:[#allocation2 + $0x36]]
        %v491 = vstv %s490
        %v492 = vmul.f32 %v406, %v491
        %v493 = vadd.f32 %v489, %v492
        %s494 = sld [smem:[#allocation2 + $0x37]]
        %v495 = vstv %s494
        %v496 = vmul.f32 %v425, %v495
        %v497 = vadd.f32 %v493, %v496
        %s498 = sld [smem:[#allocation2 + $0x3b]]
        %v499 = vstv %s498
        %v500 = vadd.f32 %v497, %v499
        %v501 = vmax.f32 %v500, 0.0
        %s502 = sld [smem:[#allocation2 + $0x3c]]
        %v503 = vstv %s502
        %v504 = vmul.f32 %v444, %v503
        %s505 = sld [smem:[#allocation2 + $0x3d]]
        %v506 = vstv %s505
        %v507 = vmul.f32 %v463, %v506
        %v508 = vadd.f32 %v504, %v507
        %s509 = sld [smem:[#allocation2 + $0x3e]]
        %v510 = vstv %s509
        %v511 = vmul.f32 %v482, %v510
        %v512 = vadd.f32 %v508, %v511
        %s513 = sld [smem:[#allocation2 + $0x3f]]
        %v514 = vstv %s513
        %v515 = vmul.f32 %v501, %v514
        %v516 = vadd.f32 %v512, %v515
        %s517 = sld [smem:[#allocation2 + $0x40]]
        %v518 = vstv %s517
        %v519 = vadd.f32 %v516, %v518
        %520 = vst [vmem:[%s252] sm:$0x3] %v519
        %s521 = sld [smem:[#allocation2 + $0x5a]]
        %v522 = vstv %s521
        %v523 = vmul.f32 %v519, %v522
        %s524 = sld [smem:[#allocation2 + $0x5e]]
        %v525 = vstv %s524
        %v526 = vadd.f32 %v523, %v525
        %v527 = vmax.f32 %v526, 0.0
        %s528 = sld [smem:[#allocation2 + $0x5b]]
        %v529 = vstv %s528
        %v530 = vmul.f32 %v519, %v529
        %s531 = sld [smem:[#allocation2 + $0x5f]]
        %v532 = vstv %s531
        %v533 = vadd.f32 %v530, %v532
        %v534 = vmax.f32 %v533, 0.0
        %s535 = sld [smem:[#allocation2 + $0x5c]]
        %v536 = vstv %s535
        %v537 = vmul.f32 %v519, %v536
        %s538 = sld [smem:[#allocation2 + $0x60]]
        %v539 = vstv %s538
        %v540 = vadd.f32 %v537, %v539
        %v541 = vmax.f32 %v540, 0.0
        %s542 = sld [smem:[#allocation2 + $0x5d]]
        %v543 = vstv %s542
        %v544 = vmul.f32 %v519, %v543
        %s545 = sld [smem:[#allocation2 + $0x61]]
        %v546 = vstv %s545
        %v547 = vadd.f32 %v544, %v546
        %v548 = vmax.f32 %v547, 0.0
        %s549 = sld [smem:[#allocation2 + $0x62]]
        %v550 = vstv %s549
        %v551 = vmul.f32 %v527, %v550
        %s552 = sld [smem:[#allocation2 + $0x63]]
        %v553 = vstv %s552
        %v554 = vmul.f32 %v534, %v553
        %v555 = vadd.f32 %v551, %v554
        %s556 = sld [smem:[#allocation2 + $0x64]]
        %v557 = vstv %s556
        %v558 = vmul.f32 %v541, %v557
        %v559 = vadd.f32 %v555, %v558
        %s560 = sld [smem:[#allocation2 + $0x65]]
        %v561 = vstv %s560
        %v562 = vmul.f32 %v548, %v561
        %v563 = vadd.f32 %v559, %v562
        %s564 = sld [smem:[#allocation2 + $0x72]]
        %v565 = vstv %s564
        %v566 = vadd.f32 %v563, %v565
        %v567 = vmax.f32 %v566, 0.0
        %s568 = sld [smem:[#allocation2 + $0x66]]
        %v569 = vstv %s568
        %v570 = vmul.f32 %v527, %v569
        %s571 = sld [smem:[#allocation2 + $0x67]]
        %v572 = vstv %s571
        %v573 = vmul.f32 %v534, %v572
        %v574 = vadd.f32 %v570, %v573
        %s575 = sld [smem:[#allocation2 + $0x68]]
        %v576 = vstv %s575
        %v577 = vmul.f32 %v541, %v576
        %v578 = vadd.f32 %v574, %v577
        %s579 = sld [smem:[#allocation2 + $0x69]]
        %v580 = vstv %s579
        %v581 = vmul.f32 %v548, %v580
        %v582 = vadd.f32 %v578, %v581
        %s583 = sld [smem:[#allocation2 + $0x73]]
        %v584 = vstv %s583
        %v585 = vadd.f32 %v582, %v584
        %v586 = vmax.f32 %v585, 0.0
        %s587 = sld [smem:[#allocation2 + $0x6a]]
        %v588 = vstv %s587
        %v589 = vmul.f32 %v527, %v588
        %s590 = sld [smem:[#allocation2 + $0x6b]]
        %v591 = vstv %s590
        %v592 = vmul.f32 %v534, %v591
        %v593 = vadd.f32 %v589, %v592
        %s594 = sld [smem:[#allocation2 + $0x6c]]
        %v595 = vstv %s594
        %v596 = vmul.f32 %v541, %v595
        %v597 = vadd.f32 %v593, %v596
        %s598 = sld [smem:[#allocation2 + $0x6d]]
        %v599 = vstv %s598
        %v600 = vmul.f32 %v548, %v599
        %v601 = vadd.f32 %v597, %v600
        %s602 = sld [smem:[#allocation2 + $0x74]]
        %v603 = vstv %s602
        %v604 = vadd.f32 %v601, %v603
        %v605 = vmax.f32 %v604, 0.0
        %s606 = sld [smem:[#allocation2 + $0x6e]]
        %v607 = vstv %s606
        %v608 = vmul.f32 %v527, %v607
        %s609 = sld [smem:[#allocation2 + $0x6f]]
        %v610 = vstv %s609
        %v611 = vmul.f32 %v534, %v610
        %v612 = vadd.f32 %v608, %v611
        %s613 = sld [smem:[#allocation2 + $0x70]]
        %v614 = vstv %s613
        %v615 = vmul.f32 %v541, %v614
        %v616 = vadd.f32 %v612, %v615
        %s617 = sld [smem:[#allocation2 + $0x71]]
        %v618 = vstv %s617
        %v619 = vmul.f32 %v548, %v618
        %v620 = vadd.f32 %v616, %v619
        %s621 = sld [smem:[#allocation2 + $0x75]]
        %v622 = vstv %s621
        %v623 = vadd.f32 %v620, %v622
        %v624 = vmax.f32 %v623, 0.0
        %s625 = sld [smem:[#allocation2 + $0x76]]
        %v626 = vstv %s625
        %v627 = vmul.f32 %v567, %v626
        %s628 = sld [smem:[#allocation2 + $0x77]]
        %v629 = vstv %s628
        %v630 = vmul.f32 %v586, %v629
        %v631 = vadd.f32 %v627, %v630
        %s632 = sld [smem:[#allocation2 + $0x78]]
        %v633 = vstv %s632
        %v634 = vmul.f32 %v605, %v633
        %v635 = vadd.f32 %v631, %v634
        %s636 = sld [smem:[#allocation2 + $0x79]]
        %v637 = vstv %s636
        %v638 = vmul.f32 %v624, %v637
        %v639 = vadd.f32 %v635, %v638
        %s640 = sld [smem:[#allocation2 + $0x7e]]
        %v641 = vstv %s640
        %v642 = vadd.f32 %v639, %v641
        %s643 = sld [smem:[#allocation2 + $0x7a]]
        %v644 = vstv %s643
        %v645 = vmul.f32 %v567, %v644
        %s646 = sld [smem:[#allocation2 + $0x7b]]
        %v647 = vstv %s646
        %v648 = vmul.f32 %v586, %v647
        %v649 = vadd.f32 %v645, %v648
        %s650 = sld [smem:[#allocation2 + $0x7c]]
        %v651 = vstv %s650
        %v652 = vmul.f32 %v605, %v651
        %v653 = vadd.f32 %v649, %v652
        %s654 = sld [smem:[#allocation2 + $0x7d]]
        %v655 = vstv %s654
        %v656 = vmul.f32 %v624, %v655
        %v657 = vadd.f32 %v653, %v656
        %s658 = sld [smem:[#allocation2 + $0x7f]]
        %v659 = vstv %s658
        %v660 = vadd.f32 %v657, %v659
        %661 = vst [vmem:[%s259] sm:$0x3] %v642
        %s662 = scalar_lea.vmem %s259, 2 [#allocation8]
        %663 = vst [vmem:[%s662] sm:$0x3] %v660
        %s664 = sld [smem:[#allocation2 + $0x41]]
        %v665 = vstv %s664
        %v666 = vmul.f32 %v267, %v665
        %s667 = sld [smem:[#allocation2 + $0x42]]
        %v668 = vstv %s667
        %v669 = vmul.f32 %v269, %v668
        %v670 = vadd.f32 %v666, %v669
        %s671 = sld [smem:[#allocation2 + $0x43]]
        %v672 = vstv %s671
        %v673 = vmul.f32 %v271, %v672
        %v674 = vadd.f32 %v670, %v673
        %s675 = sld [smem:[#allocation2 + $0x44]]
        %v676 = vstv %s675
        %v677 = vmul.f32 %v273, %v676
        %v678 = vadd.f32 %v674, %v677
        %s679 = sld [smem:[#allocation2 + $0x51]]
        %v680 = vstv %s679
        %v681 = vadd.f32 %v678, %v680
        %v682 = vmax.f32 %v681, 0.0
        %s683 = sld [smem:[#allocation2 + $0x45]]
        %v684 = vstv %s683
        %v685 = vmul.f32 %v267, %v684
        %s686 = sld [smem:[#allocation2 + $0x46]]
        %v687 = vstv %s686
        %v688 = vmul.f32 %v269, %v687
        %v689 = vadd.f32 %v685, %v688
        %s690 = sld [smem:[#allocation2 + $0x47]]
        %v691 = vstv %s690
        %v692 = vmul.f32 %v271, %v691
        %v693 = vadd.f32 %v689, %v692
        %s694 = sld [smem:[#allocation2 + $0x48]]
        %v695 = vstv %s694
        %v696 = vmul.f32 %v273, %v695
        %v697 = vadd.f32 %v693, %v696
        %s698 = sld [smem:[#allocation2 + $0x52]]
        %v699 = vstv %s698
        %v700 = vadd.f32 %v697, %v699
        %v701 = vmax.f32 %v700, 0.0
        %s702 = sld [smem:[#allocation2 + $0x49]]
        %v703 = vstv %s702
        %v704 = vmul.f32 %v267, %v703
        %s705 = sld [smem:[#allocation2 + $0x4a]]
        %v706 = vstv %s705
        %v707 = vmul.f32 %v269, %v706
        %v708 = vadd.f32 %v704, %v707
        %s709 = sld [smem:[#allocation2 + $0x4b]]
        %v710 = vstv %s709
        %v711 = vmul.f32 %v271, %v710
        %v712 = vadd.f32 %v708, %v711
        %s713 = sld [smem:[#allocation2 + $0x4c]]
        %v714 = vstv %s713
        %v715 = vmul.f32 %v273, %v714
        %v716 = vadd.f32 %v712, %v715
        %s717 = sld [smem:[#allocation2 + $0x53]]
        %v718 = vstv %s717
        %v719 = vadd.f32 %v716, %v718
        %v720 = vmax.f32 %v719, 0.0
        %s721 = sld [smem:[#allocation2 + $0x4d]]
        %v722 = vstv %s721
        %v723 = vmul.f32 %v267, %v722
        %s724 = sld [smem:[#allocation2 + $0x4e]]
        %v725 = vstv %s724
        %v726 = vmul.f32 %v269, %v725
        %v727 = vadd.f32 %v723, %v726
        %s728 = sld [smem:[#allocation2 + $0x4f]]
        %v729 = vstv %s728
        %v730 = vmul.f32 %v271, %v729
        %v731 = vadd.f32 %v727, %v730
        %s732 = sld [smem:[#allocation2 + $0x50]]
        %v733 = vstv %s732
        %v734 = vmul.f32 %v273, %v733
        %v735 = vadd.f32 %v731, %v734
        %s736 = sld [smem:[#allocation2 + $0x54]]
        %v737 = vstv %s736
        %v738 = vadd.f32 %v735, %v737
        %v739 = vmax.f32 %v738, 0.0
        %s740 = sld [smem:[#allocation2 + $0x55]]
        %v741 = vstv %s740
        %v742 = vmul.f32 %v682, %v741
        %s743 = sld [smem:[#allocation2 + $0x56]]
        %v744 = vstv %s743
        %v745 = vmul.f32 %v701, %v744
        %v746 = vadd.f32 %v742, %v745
        %s747 = sld [smem:[#allocation2 + $0x57]]
        %v748 = vstv %s747
        %v749 = vmul.f32 %v720, %v748
        %v750 = vadd.f32 %v746, %v749
        %s751 = sld [smem:[#allocation2 + $0x58]]
        %v752 = vstv %s751
        %v753 = vmul.f32 %v739, %v752
        %v754 = vadd.f32 %v750, %v753
        %s755 = sld [smem:[#allocation2 + $0x59]]
        %v756 = vstv %s755
        %v757 = vadd.f32 %v754, %v756
        %758 = vst [vmem:[%s266] sm:$0x3] %v757
        %s759 = sand.u32 %s97, 1
        %s760 = scalar_lea.sflag [#allocation4], %s759
        %s761 = sand.u32 %s97, 1
        %s762 = smul.addr %s761, 2
        %s763 = scalar_lea.vmem [#allocation7], %s762
        %s764 = sand.u32 %s26, 1
        %s765 = scalar_lea.sflag [#allocation9], %s764
        %s766 = sand.u32 %s125, 1
        %s767 = smul.addr %s766, 4
        %s768 = scalar_lea.vmem [#allocation8], %s767
        %s769 = sand.u32 %s26, 1
        %s770 = scalar_lea.sflag [#allocation9], %s769
        %s771 = sand.u32 %s153, 1
        %s772 = smul.addr %s771, 2
        %s773 = scalar_lea.vmem [#allocation10], %s772
        // Predicated region
        $region37: #{tpu_custom_call.1} parent=27 // pred_check
          %p774 = pneg %p107
        $region38: #{tpu_custom_call.1} parent=27 // pred_check_branch
          %776 = sbr.rel (%p774) target = $region40
        $region39: #{tpu_custom_call.1} parent=27 // pred_region
          %s778 = ssub.s32 32, 32
          %779 = vsyncadd %s760, %s778
          %s780 = sadd.s32 %s31, %s30
          %s781 = smul.addr %s780, 32
          %s782 = scalar_lea.hbm %s2, %s781
          %s784 = sshll.u32 %s763, 4
          %s785 = int_to_ptr.vmem [resolvable:$true] %s784
          %787 = dma.vmem_to_hbm [thread:$0]  %s785, 32, %s782, %s760
        $region40: #{tpu_custom_call.1} parent=27 // pred_fallthru
          _
        // Predicated region
        $region41: #{tpu_custom_call.1} parent=27 // pred_check
          %p788 = pneg %p135
        $region42: #{tpu_custom_call.1} parent=27 // pred_check_branch
          %790 = sbr.rel (%p788) target = $region44
        $region43: #{tpu_custom_call.1} parent=27 // pred_region
          %s792 = ssub.s32 64, 64
          %793 = vsyncadd %s765, %s792
          %s794 = smul.addr %s30, 2
          %s795 = sadd.s32 %s31, %s794
          %s796 = smul.addr %s795, 32
          %s797 = scalar_lea.hbm %s3, %s796
          %s798 = sshll.u32 %s768, 4
          %s799 = int_to_ptr.vmem [resolvable:$true] %s798
          %804 = dma.vmem_to_hbm [thread:$0]  %s799, 64, %s797, %s765, 32, 32, 2
        $region44: #{tpu_custom_call.1} parent=27 // pred_fallthru
          _
        // Predicated region
        $region45: #{tpu_custom_call.1} parent=27 // pred_check
          %p805 = pneg %p163
        $region46: #{tpu_custom_call.1} parent=27 // pred_check_branch
          %807 = sbr.rel (%p805) target = $region48
        $region47: #{tpu_custom_call.1} parent=27 // pred_region
          %s809 = ssub.s32 32, 32
          %810 = vsyncadd %s770, %s809
          %s811 = sadd.s32 %s31, %s30
          %s812 = smul.addr %s811, 32
          %s813 = scalar_lea.hbm %s4, %s812
          %s815 = sshll.u32 %s773, 4
          %s816 = int_to_ptr.vmem [resolvable:$true] %s815
          %818 = dma.vmem_to_hbm [thread:$0]  %s816, 32, %s813, %s770
        $region48: #{tpu_custom_call.1} parent=27 // pred_fallthru
          _
      $region28: #{tpu_custom_call.1} parent=5 // pred_fallthru
        _
      %p819 = scmp.le.s32.totalorder 2, %s21
      // Predicated region
      $region49: #{tpu_custom_call.1} parent=5 // pred_check
        %p820 = pneg %p819
      $region50: #{tpu_custom_call.1} parent=5 // pred_check_branch
        %822 = sbr.rel (%p820) target = $region52
      $region51: #{tpu_custom_call.1} parent=5 // pred_region
        %s823 = ssub.s32 %s21, 2
        // Predicated region
        $region53: #{tpu_custom_call.1} parent=51 // pred_check
          %p824 = pneg %p113
        $region54: #{tpu_custom_call.1} parent=51 // pred_check_branch
          %826 = sbr.rel (%p824) target = $region56
        $region55: #{tpu_custom_call.1} parent=51 // pred_region
          %s827 = sand.u32 %s98, 1
          %s828 = scalar_lea.sflag [#allocation4], %s827
          %s829 = sand.u32 %s98, 1
          %s830 = smul.addr %s829, 2
          %s831 = scalar_lea.vmem [#allocation7], %s830
          %832 = dma.done %s828, 32
        $region56: #{tpu_custom_call.1} parent=51 // pred_fallthru
          _
        // Predicated region
        $region57: #{tpu_custom_call.1} parent=51 // pred_check
          %p833 = pneg %p141
        $region58: #{tpu_custom_call.1} parent=51 // pred_check_branch
          %835 = sbr.rel (%p833) target = $region60
        $region59: #{tpu_custom_call.1} parent=51 // pred_region
          %s836 = sand.u32 %s27, 1
          %s837 = scalar_lea.sflag [#allocation9], %s836
          %s838 = sand.u32 %s126, 1
          %s839 = smul.addr %s838, 4
          %s840 = scalar_lea.vmem [#allocation8], %s839
          %841 = dma.done %s837, 64
        $region60: #{tpu_custom_call.1} parent=51 // pred_fallthru
          _
        // Predicated region
        $region61: #{tpu_custom_call.1} parent=51 // pred_check
          %p842 = pneg %p169
        $region62: #{tpu_custom_call.1} parent=51 // pred_check_branch
          %844 = sbr.rel (%p842) target = $region64
        $region63: #{tpu_custom_call.1} parent=51 // pred_region
          %s845 = sand.u32 %s27, 1
          %s846 = scalar_lea.sflag [#allocation9], %s845
          %s847 = sand.u32 %s154, 1
          %s848 = smul.addr %s847, 2
          %s849 = scalar_lea.vmem [#allocation10], %s848
          %850 = dma.done %s846, 32
        $region64: #{tpu_custom_call.1} parent=51 // pred_fallthru
          _
      $region52: #{tpu_custom_call.1} parent=5 // pred_fallthru
        _
    $region6: #{tpu_custom_call.1} parent=1 // loop_footer
      %s25 = sadd.s32 1, %s21
    $region7: #{tpu_custom_call.1} parent=1 // loop_footer_branch
      %20 = sbr.rel target = $region3
    $region8: #{tpu_custom_call.1} parent=1 // loop_exit
      _
    %851 = vsyncpa [#allocation3], 1
    %s852 = scalar_lea.sflag [#allocation3], 1
    %853 = vsyncpa %s852, 1
    %854 = vsyncpa [#allocation4], 1
    %s855 = scalar_lea.sflag [#allocation4], 1
    %856 = vsyncpa %s855, 1
    %857 = vsyncpa [#allocation9], 1
    %s858 = scalar_lea.sflag [#allocation9], 1
    %859 = vsyncpa %s858, 1
    %860 = vsyncpa [#allocation5], 1
    %s861 = scalar_lea.sflag [#allocation5], 1
    %862 = vsyncpa %s861, 1

</llo_original>
